<compile_context>
chip_gen: v7x
topology: tpu7x:2x2x1
jax: 0.10.0
libtpu: 0.0.40
codegen_flags: <defaults>
</compile_context>

<pallas_src>
import numpy as np
import jax
import jax.numpy as jnp
from jax.experimental import pallas as pl
from jax.experimental.pallas import tpu as pltpu

# ---------------- problem sizes ----------------
N, C_IN, H, W = 1, 3, 64, 64
K, S = 5, 2                                   # avg-pool kernel / stride
HO, WO = -(-H // S), -(-W // S)               # 32, 32 (SAME output size)
PAD_TOT = max((HO - 1) * S + K - H, 0)        # 3
PAD_LO = PAD_TOT // 2                         # 1
C_OUT = 8
H_CONV, W_CONV = HO + 2, WO + 2               # 34, 34 (1x1 conv with padding=1)
NPIX = H_CONV * W_CONV                        # 1156  flattened (framed) image
ROWS_IN = C_IN * H                            # 192   stacked input rows
ROWS_T = C_IN * H_CONV                        # 102   row-pooled rows (i-major)
ROWS_T_PAD = 104                              # padded to a multiple of 8
PC = 8                                        # pooled-slab sublanes (6 ch + 1 + pad)


# ---------------- Pallas kernel (fully fused) ----------------
def fused_kernel(x_ref, akp_ref, atb_ref, wc_ref, o_ref, pflat_ref):
    # (1) row pooling, both images + all channels in ONE matmul:
    #     (104,192) @ (192,128) -> (104,128);  row r = i*3 + c, lanes = [x1 w | x2 w]
    t = jnp.dot(akp_ref[...], x_ref[...], preferred_element_type=jnp.float32)
    # (2) column pooling, both images at once via block-diag(Af^T, Af^T):
    #     (104,128) @ (128,68) -> (104,68);  lanes = [x1 j (34) | x2 j (34)]
    p = jnp.dot(t, atb_ref[...], preferred_element_type=jnp.float32)

    # (3) relayout into a channel-major, lane-dense pooled slab pflat (8, 1156):
    #     rows 0..2 = pooled x1 channels, rows 3..5 = pooled x2 channels
    #     (framed: frame pixels are 0), row 6 = constant 1 (carries the bias
    #     through the conv matmul), row 7 = 0 (padding).
    pflat_ref[6:7, :] = jnp.ones((1, NPIX), jnp.float32)
    pflat_ref[7:8, :] = jnp.zeros((1, NPIX), jnp.float32)
    for i in range(H_CONV):                                   # 34 static steps
        blk = p[i * C_IN:(i + 1) * C_IN, :]                   # (3, 68)
        pflat_ref[0:C_IN, i * W_CONV:(i + 1) * W_CONV] = blk[:, 0:W_CONV]
        pflat_ref[C_IN:2 * C_IN, i * W_CONV:(i + 1) * W_CONV] = blk[:, W_CONV:2 * W_CONV]

    # (4) all four 1x1 convs + add/sub + bias as ONE tiny matmul:
    #     (16,8) @ (8,1156) -> (16,1156);  rows 0..7 = conv1(v1)+conv2(v2),
    #     rows 8..15 = conv3(v1)-conv4(v2); frame pixels get bias only.
    conv = jnp.dot(wc_ref[...], pflat_ref[...], preferred_element_type=jnp.float32)

    # (5) final elementwise product, lane-dense (8, 1156) store.
    o_ref[...] = conv[0:C_OUT, :] * conv[C_OUT:2 * C_OUT, :]


@jax.jit
def forward(x1, x2, params):
    """x1, x2: (1, 3, 64, 64) NCHW float32 -> (1, 8, 34, 34)."""
    # fuse both images along lanes -> exactly one full 128-lane tile
    xin = jnp.concatenate([x1.reshape(ROWS_IN, W), x2.reshape(ROWS_IN, W)],
                          axis=1)                              # (192, 128)
    vmem = pltpu.MemorySpace.VMEM
    flat = pl.pallas_call(
        fused_kernel,
        out_shape=jax.ShapeDtypeStruct((C_OUT, NPIX), jnp.float32),
        in_specs=[pl.BlockSpec(memory_space=vmem)] * 4,
        out_specs=pl.BlockSpec(memory_space=vmem),
        scratch_shapes=[pltpu.VMEM((PC, NPIX), jnp.float32)],
    )(xin, params["akp"], params["atb"], params["wc"])        # (8, 1156)
    return flat.reshape(N, C_OUT, H_CONV, W_CONV)             # free row-major reshape


# ---------------- one-time host-side parameter folding ----------------
def prepare_params(weights, biases):
    w1, w2, w3, w4 = [np.asarray(w, np.float32) for w in weights]   # (8, 3)
    b1, b2, b3, b4 = [np.asarray(b, np.float32) for b in biases]    # (8,)

    # framed, clipped SAME pooling matrix (zero padding folded in; divisor 25
    # folded into the conv weights below) -> entries are exactly 0/1.
    Af = np.zeros((H_CONV, H), np.float32)                    # (34, 64)
    for i in range(HO):
        lo = max(0, S * i - PAD_LO)
        hi = min(H, S * i - PAD_LO + K)
        Af[i + 1, lo:hi] = 1.0

    # row-pool matrix, (i-major, c-minor) row order, padded 102 -> 104 rows
    akp = np.zeros((ROWS_T_PAD, ROWS_IN), np.float32)         # (104, 192)
    for i in range(H_CONV):
        for c in range(C_IN):
            akp[i * C_IN + c, c * H:(c + 1) * H] = Af[i]

    # column-pool, block-diagonal over the two lane-fused images
    atb = np.zeros((2 * W, 2 * W_CONV), np.float32)           # (128, 68)
    atb[0:W, 0:W_CONV] = Af.T
    atb[W:2 * W, W_CONV:2 * W_CONV] = Af.T

    # channel-mixing conv weights with 1/25 folded in; column 6 multiplies the
    # constant-1 row of the pooled slab and therefore carries the fused bias.
    inv = 1.0 / float(K * K)
    wc = np.zeros((2 * C_OUT, PC), np.float32)                # (16, 8)
    wc[0:C_OUT, 0:3] = w1 * inv
    wc[0:C_OUT, 3:6] = w2 * inv
    wc[0:C_OUT, 6] = b1 + b2
    wc[C_OUT:, 0:3] = w3 * inv
    wc[C_OUT:, 3:6] = -w4 * inv
    wc[C_OUT:, 6] = b3 - b4

    return {k: jnp.asarray(v) for k, v in dict(akp=akp, atb=atb, wc=wc).items()}


# ---------------- pure-JAX reference (for sanity check) ----------------
def reference(x1, x2, weights, biases):
    pad_hi = PAD_TOT - PAD_LO

    def pool(x):
        xp = jnp.pad(x, ((0, 0), (0, 0), (PAD_LO, pad_hi), (PAD_LO, pad_hi)))
        acc = jnp.zeros((N, C_IN, HO, WO), jnp.float32)
        for di in range(K):
            for dj in range(K):
                acc = acc + xp[:, :, di:di + S * (HO - 1) + 1:S,
                               dj:dj + S * (WO - 1) + 1:S]
        return acc / (K * K)

    def conv1x1_pad1(x, w, b):
        y = jnp.einsum('oc,nchw->nohw', w, x)
        y = jnp.pad(y, ((0, 0), (0, 0), (1, 1), (1, 1)))
        return y + b[None, :, None, None]

    w1, w2, w3, w4 = weights
    b1, b2, b3, b4 = biases
    v1, v2 = pool(x1), pool(x2)
    v5 = conv1x1_pad1(v1, w1, b1) + conv1x1_pad1(v2, w2, b2)
    v8 = conv1x1_pad1(v1, w3, b3) - conv1x1_pad1(v2, w4, b4)
    return v5 * v8


# ---------------- main ----------------
if __name__ == "__main__":
    key = jax.random.PRNGKey(0)
    k1, k2, kw, kb = jax.random.split(key, 4)

    x1 = jax.random.normal(k1, (N, C_IN, H, W), jnp.float32)
    x2 = jax.random.normal(k2, (N, C_IN, H, W), jnp.float32)

    wk = jax.random.split(kw, 4)
    bk = jax.random.split(kb, 4)
    weights = tuple(0.1 * jax.random.normal(wk[i], (C_OUT, C_IN), jnp.float32)
                    for i in range(4))
    biases = tuple(0.1 * jax.random.normal(bk[i], (C_OUT,), jnp.float32)
                   for i in range(4))

    params = prepare_params(weights, biases)

    out = jax.block_until_ready(forward(x1, x2, params))

    ref = reference(x1, x2, weights, biases)
    assert out.shape == (N, C_OUT, H_CONV, W_CONV), out.shape
    np.testing.assert_allclose(np.asarray(out), np.asarray(ref), rtol=1e-4, atol=1e-4)

    print("KERNEL_OK")
</pallas_src>

<mosaic_0001>
module attributes {stable_mosaic.version = 11 : i64} {
  func.func @fused_kernel(%arg0: memref<192x128xf32, #tpu.memory_space<vmem>>, %arg1: memref<104x192xf32, #tpu.memory_space<vmem>>, %arg2: memref<128x68xf32, #tpu.memory_space<vmem>>, %arg3: memref<16x8xf32, #tpu.memory_space<vmem>>, %arg4: memref<8x1156xf32, #tpu.memory_space<vmem>>, %arg5: memref<8x1156xf32, #tpu.memory_space<vmem>>) attributes {dimension_semantics = [], scalar_prefetch = 0 : i64, scratch_operands = 1 : i64, tpu.core_type = #tpu.core_type<tc>} {
    %c0 = arith.constant 0 : index
    %c0_0 = arith.constant 0 : index
    %0 = vector.load %arg1[%c0, %c0_0] : memref<104x192xf32, #tpu.memory_space<vmem>>, vector<104x192xf32>
    %c0_1 = arith.constant 0 : index
    %c0_2 = arith.constant 0 : index
    %1 = vector.load %arg0[%c0_1, %c0_2] : memref<192x128xf32, #tpu.memory_space<vmem>>, vector<192x128xf32>
    %cst = arith.constant dense<0.000000e+00> : vector<104x128xf32>
    %2 = tpu.matmul %0, %1, %cst {dimension_numbers = #tpu.dot_dimension_numbers<[1], [0], [0], [1], [0, 0, 1, 1], [], []>} : vector<104x192xf32>, vector<192x128xf32>, vector<104x128xf32> -> vector<104x128xf32>
    %c0_3 = arith.constant 0 : index
    %c0_4 = arith.constant 0 : index
    %3 = vector.load %arg2[%c0_3, %c0_4] : memref<128x68xf32, #tpu.memory_space<vmem>>, vector<128x68xf32>
    %cst_5 = arith.constant dense<0.000000e+00> : vector<104x68xf32>
    %4 = tpu.matmul %2, %3, %cst_5 {dimension_numbers = #tpu.dot_dimension_numbers<[1], [0], [0], [1], [0, 0, 1, 1], [], []>} : vector<104x128xf32>, vector<128x68xf32>, vector<104x68xf32> -> vector<104x68xf32>
    %cst_6 = arith.constant 1.000000e+00 : f32
    %5 = vector.broadcast %cst_6 : f32 to vector<1x1156xf32>
    %c6 = arith.constant 6 : index
    %c0_7 = arith.constant 0 : index
    %6 = vector.load %arg5[%c6, %c0_7] : memref<8x1156xf32, #tpu.memory_space<vmem>>, vector<1x1156xf32>
    tpu.vector_store %arg5[%c6, %c0_7], %5 {strides = array<i32>} : memref<8x1156xf32, #tpu.memory_space<vmem>>, vector<1x1156xf32>,
    %cst_8 = arith.constant 0.000000e+00 : f32
    %7 = vector.broadcast %cst_8 : f32 to vector<1x1156xf32>
    %c7 = arith.constant 7 : index
    %c0_9 = arith.constant 0 : index
    %8 = vector.load %arg5[%c7, %c0_9] : memref<8x1156xf32, #tpu.memory_space<vmem>>, vector<1x1156xf32>
    tpu.vector_store %arg5[%c7, %c0_9], %7 {strides = array<i32>} : memref<8x1156xf32, #tpu.memory_space<vmem>>, vector<1x1156xf32>,
    %9 = vector.extract_strided_slice %4 {offsets = [0, 0], sizes = [3, 68], strides = [1, 1]} : vector<104x68xf32> to vector<3x68xf32>
    %10 = vector.extract_strided_slice %9 {offsets = [0, 0], sizes = [3, 34], strides = [1, 1]} : vector<3x68xf32> to vector<3x34xf32>
    %c0_10 = arith.constant 0 : index
    %c0_11 = arith.constant 0 : index
    %11 = vector.load %arg5[%c0_10, %c0_11] : memref<8x1156xf32, #tpu.memory_space<vmem>>, vector<3x34xf32>
    tpu.vector_store %arg5[%c0_10, %c0_11], %10 {strides = array<i32>} : memref<8x1156xf32, #tpu.memory_space<vmem>>, vector<3x34xf32>,
    %12 = vector.extract_strided_slice %9 {offsets = [0, 34], sizes = [3, 34], strides = [1, 1]} : vector<3x68xf32> to vector<3x34xf32>
    %c3 = arith.constant 3 : index
    %c0_12 = arith.constant 0 : index
    %13 = vector.load %arg5[%c3, %c0_12] : memref<8x1156xf32, #tpu.memory_space<vmem>>, vector<3x34xf32>
    tpu.vector_store %arg5[%c3, %c0_12], %12 {strides = array<i32>} : memref<8x1156xf32, #tpu.memory_space<vmem>>, vector<3x34xf32>,
    %14 = vector.extract_strided_slice %4 {offsets = [3, 0], sizes = [3, 68], strides = [1, 1]} : vector<104x68xf32> to vector<3x68xf32>
    %15 = vector.extract_strided_slice %14 {offsets = [0, 0], sizes = [3, 34], strides = [1, 1]} : vector<3x68xf32> to vector<3x34xf32>
    %c0_13 = arith.constant 0 : index
    %c34 = arith.constant 34 : index
    %16 = vector.load %arg5[%c0_13, %c34] : memref<8x1156xf32, #tpu.memory_space<vmem>>, vector<3x34xf32>
    tpu.vector_store %arg5[%c0_13, %c34], %15 {strides = array<i32>} : memref<8x1156xf32, #tpu.memory_space<vmem>>, vector<3x34xf32>,
    %17 = vector.extract_strided_slice %14 {offsets = [0, 34], sizes = [3, 34], strides = [1, 1]} : vector<3x68xf32> to vector<3x34xf32>
    %c3_14 = arith.constant 3 : index
    %c34_15 = arith.constant 34 : index
    %18 = vector.load %arg5[%c3_14, %c34_15] : memref<8x1156xf32, #tpu.memory_space<vmem>>, vector<3x34xf32>
    tpu.vector_store %arg5[%c3_14, %c34_15], %17 {strides = array<i32>} : memref<8x1156xf32, #tpu.memory_space<vmem>>, vector<3x34xf32>,
    %19 = vector.extract_strided_slice %4 {offsets = [6, 0], sizes = [3, 68], strides = [1, 1]} : vector<104x68xf32> to vector<3x68xf32>
    %20 = vector.extract_strided_slice %19 {offsets = [0, 0], sizes = [3, 34], strides = [1, 1]} : vector<3x68xf32> to vector<3x34xf32>
    %c0_16 = arith.constant 0 : index
    %c68 = arith.constant 68 : index
    %21 = vector.load %arg5[%c0_16, %c68] : memref<8x1156xf32, #tpu.memory_space<vmem>>, vector<3x34xf32>
    tpu.vector_store %arg5[%c0_16, %c68], %20 {strides = array<i32>} : memref<8x1156xf32, #tpu.memory_space<vmem>>, vector<3x34xf32>,
    %22 = vector.extract_strided_slice %19 {offsets = [0, 34], sizes = [3, 34], strides = [1, 1]} : vector<3x68xf32> to vector<3x34xf32>
    %c3_17 = arith.constant 3 : index
    %c68_18 = arith.constant 68 : index
    %23 = vector.load %arg5[%c3_17, %c68_18] : memref<8x1156xf32, #tpu.memory_space<vmem>>, vector<3x34xf32>
    tpu.vector_store %arg5[%c3_17, %c68_18], %22 {strides = array<i32>} : memref<8x1156xf32, #tpu.memory_space<vmem>>, vector<3x34xf32>,
    %24 = vector.extract_strided_slice %4 {offsets = [9, 0], sizes = [3, 68], strides = [1, 1]} : vector<104x68xf32> to vector<3x68xf32>
    %25 = vector.extract_strided_slice %24 {offsets = [0, 0], sizes = [3, 34], strides = [1, 1]} : vector<3x68xf32> to vector<3x34xf32>
    %c0_19 = arith.constant 0 : index
    %c102 = arith.constant 102 : index
    %26 = vector.load %arg5[%c0_19, %c102] : memref<8x1156xf32, #tpu.memory_space<vmem>>, vector<3x34xf32>
    tpu.vector_store %arg5[%c0_19, %c102], %25 {strides = array<i32>} : memref<8x1156xf32, #tpu.memory_space<vmem>>, vector<3x34xf32>,
    %27 = vector.extract_strided_slice %24 {offsets = [0, 34], sizes = [3, 34], strides = [1, 1]} : vector<3x68xf32> to vector<3x34xf32>
    %c3_20 = arith.constant 3 : index
    %c102_21 = arith.constant 102 : index
    %28 = vector.load %arg5[%c3_20, %c102_21] : memref<8x1156xf32, #tpu.memory_space<vmem>>, vector<3x34xf32>
    tpu.vector_store %arg5[%c3_20, %c102_21], %27 {strides = array<i32>} : memref<8x1156xf32, #tpu.memory_space<vmem>>, vector<3x34xf32>,
    %29 = vector.extract_strided_slice %4 {offsets = [12, 0], sizes = [3, 68], strides = [1, 1]} : vector<104x68xf32> to vector<3x68xf32>
    %30 = vector.extract_strided_slice %29 {offsets = [0, 0], sizes = [3, 34], strides = [1, 1]} : vector<3x68xf32> to vector<3x34xf32>
    %c0_22 = arith.constant 0 : index
    %c136 = arith.constant 136 : index
    %31 = vector.load %arg5[%c0_22, %c136] : memref<8x1156xf32, #tpu.memory_space<vmem>>, vector<3x34xf32>
    tpu.vector_store %arg5[%c0_22, %c136], %30 {strides = array<i32>} : memref<8x1156xf32, #tpu.memory_space<vmem>>, vector<3x34xf32>,
    %32 = vector.extract_strided_slice %29 {offsets = [0, 34], sizes = [3, 34], strides = [1, 1]} : vector<3x68xf32> to vector<3x34xf32>
    %c3_23 = arith.constant 3 : index
    %c136_24 = arith.constant 136 : index
    %33 = vector.load %arg5[%c3_23, %c136_24] : memref<8x1156xf32, #tpu.memory_space<vmem>>, vector<3x34xf32>
    tpu.vector_store %arg5[%c3_23, %c136_24], %32 {strides = array<i32>} : memref<8x1156xf32, #tpu.memory_space<vmem>>, vector<3x34xf32>,
    %34 = vector.extract_strided_slice %4 {offsets = [15, 0], sizes = [3, 68], strides = [1, 1]} : vector<104x68xf32> to vector<3x68xf32>
    %35 = vector.extract_strided_slice %34 {offsets = [0, 0], sizes = [3, 34], strides = [1, 1]} : vector<3x68xf32> to vector<3x34xf32>
    %c0_25 = arith.constant 0 : index
    %c170 = arith.constant 170 : index
    %36 = vector.load %arg5[%c0_25, %c170] : memref<8x1156xf32, #tpu.memory_space<vmem>>, vector<3x34xf32>
    tpu.vector_store %arg5[%c0_25, %c170], %35 {strides = array<i32>} : memref<8x1156xf32, #tpu.memory_space<vmem>>, vector<3x34xf32>,
    %37 = vector.extract_strided_slice %34 {offsets = [0, 34], sizes = [3, 34], strides = [1, 1]} : vector<3x68xf32> to vector<3x34xf32>
    %c3_26 = arith.constant 3 : index
    %c170_27 = arith.constant 170 : index
    %38 = vector.load %arg5[%c3_26, %c170_27] : memref<8x1156xf32, #tpu.memory_space<vmem>>, vector<3x34xf32>
    tpu.vector_store %arg5[%c3_26, %c170_27], %37 {strides = array<i32>} : memref<8x1156xf32, #tpu.memory_space<vmem>>, vector<3x34xf32>,
    %39 = vector.extract_strided_slice %4 {offsets = [18, 0], sizes = [3, 68], strides = [1, 1]} : vector<104x68xf32> to vector<3x68xf32>
    %40 = vector.extract_strided_slice %39 {offsets = [0, 0], sizes = [3, 34], strides = [1, 1]} : vector<3x68xf32> to vector<3x34xf32>
    %c0_28 = arith.constant 0 : index
    %c204 = arith.constant 204 : index
    %41 = vector.load %arg5[%c0_28, %c204] : memref<8x1156xf32, #tpu.memory_space<vmem>>, vector<3x34xf32>
    tpu.vector_store %arg5[%c0_28, %c204], %40 {strides = array<i32>} : memref<8x1156xf32, #tpu.memory_space<vmem>>, vector<3x34xf32>,
    %42 = vector.extract_strided_slice %39 {offsets = [0, 34], sizes = [3, 34], strides = [1, 1]} : vector<3x68xf32> to vector<3x34xf32>
    %c3_29 = arith.constant 3 : index
    %c204_30 = arith.constant 204 : index
    %43 = vector.load %arg5[%c3_29, %c204_30] : memref<8x1156xf32, #tpu.memory_space<vmem>>, vector<3x34xf32>
    tpu.vector_store %arg5[%c3_29, %c204_30], %42 {strides = array<i32>} : memref<8x1156xf32, #tpu.memory_space<vmem>>, vector<3x34xf32>,
    %44 = vector.extract_strided_slice %4 {offsets = [21, 0], sizes = [3, 68], strides = [1, 1]} : vector<104x68xf32> to vector<3x68xf32>
    %45 = vector.extract_strided_slice %44 {offsets = [0, 0], sizes = [3, 34], strides = [1, 1]} : vector<3x68xf32> to vector<3x34xf32>
    %c0_31 = arith.constant 0 : index
    %c238 = arith.constant 238 : index
    %46 = vector.load %arg5[%c0_31, %c238] : memref<8x1156xf32, #tpu.memory_space<vmem>>, vector<3x34xf32>
    tpu.vector_store %arg5[%c0_31, %c238], %45 {strides = array<i32>} : memref<8x1156xf32, #tpu.memory_space<vmem>>, vector<3x34xf32>,
    %47 = vector.extract_strided_slice %44 {offsets = [0, 34], sizes = [3, 34], strides = [1, 1]} : vector<3x68xf32> to vector<3x34xf32>
    %c3_32 = arith.constant 3 : index
    %c238_33 = arith.constant 238 : index
    %48 = vector.load %arg5[%c3_32, %c238_33] : memref<8x1156xf32, #tpu.memory_space<vmem>>, vector<3x34xf32>
    tpu.vector_store %arg5[%c3_32, %c238_33], %47 {strides = array<i32>} : memref<8x1156xf32, #tpu.memory_space<vmem>>, vector<3x34xf32>,
    %49 = vector.extract_strided_slice %4 {offsets = [24, 0], sizes = [3, 68], strides = [1, 1]} : vector<104x68xf32> to vector<3x68xf32>
    %50 = vector.extract_strided_slice %49 {offsets = [0, 0], sizes = [3, 34], strides = [1, 1]} : vector<3x68xf32> to vector<3x34xf32>
    %c0_34 = arith.constant 0 : index
    %c272 = arith.constant 272 : index
    %51 = vector.load %arg5[%c0_34, %c272] : memref<8x1156xf32, #tpu.memory_space<vmem>>, vector<3x34xf32>
    tpu.vector_store %arg5[%c0_34, %c272], %50 {strides = array<i32>} : memref<8x1156xf32, #tpu.memory_space<vmem>>, vector<3x34xf32>,
    %52 = vector.extract_strided_slice %49 {offsets = [0, 34], sizes = [3, 34], strides = [1, 1]} : vector<3x68xf32> to vector<3x34xf32>
    %c3_35 = arith.constant 3 : index
    %c272_36 = arith.constant 272 : index
    %53 = vector.load %arg5[%c3_35, %c272_36] : memref<8x1156xf32, #tpu.memory_space<vmem>>, vector<3x34xf32>
    tpu.vector_store %arg5[%c3_35, %c272_36], %52 {strides = array<i32>} : memref<8x1156xf32, #tpu.memory_space<vmem>>, vector<3x34xf32>,
    %54 = vector.extract_strided_slice %4 {offsets = [27, 0], sizes = [3, 68], strides = [1, 1]} : vector<104x68xf32> to vector<3x68xf32>
    %55 = vector.extract_strided_slice %54 {offsets = [0, 0], sizes = [3, 34], strides = [1, 1]} : vector<3x68xf32> to vector<3x34xf32>
    %c0_37 = arith.constant 0 : index
    %c306 = arith.constant 306 : index
    %56 = vector.load %arg5[%c0_37, %c306] : memref<8x1156xf32, #tpu.memory_space<vmem>>, vector<3x34xf32>
    tpu.vector_store %arg5[%c0_37, %c306], %55 {strides = array<i32>} : memref<8x1156xf32, #tpu.memory_space<vmem>>, vector<3x34xf32>,
    %57 = vector.extract_strided_slice %54 {offsets = [0, 34], sizes = [3, 34], strides = [1, 1]} : vector<3x68xf32> to vector<3x34xf32>
    %c3_38 = arith.constant 3 : index
    %c306_39 = arith.constant 306 : index
    %58 = vector.load %arg5[%c3_38, %c306_39] : memref<8x1156xf32, #tpu.memory_space<vmem>>, vector<3x34xf32>
    tpu.vector_store %arg5[%c3_38, %c306_39], %57 {strides = array<i32>} : memref<8x1156xf32, #tpu.memory_space<vmem>>, vector<3x34xf32>,
    %59 = vector.extract_strided_slice %4 {offsets = [30, 0], sizes = [3, 68], strides = [1, 1]} : vector<104x68xf32> to vector<3x68xf32>
    %60 = vector.extract_strided_slice %59 {offsets = [0, 0], sizes = [3, 34], strides = [1, 1]} : vector<3x68xf32> to vector<3x34xf32>
    %c0_40 = arith.constant 0 : index
    %c340 = arith.constant 340 : index
    %61 = vector.load %arg5[%c0_40, %c340] : memref<8x1156xf32, #tpu.memory_space<vmem>>, vector<3x34xf32>
    tpu.vector_store %arg5[%c0_40, %c340], %60 {strides = array<i32>} : memref<8x1156xf32, #tpu.memory_space<vmem>>, vector<3x34xf32>,
    %62 = vector.extract_strided_slice %59 {offsets = [0, 34], sizes = [3, 34], strides = [1, 1]} : vector<3x68xf32> to vector<3x34xf32>
    %c3_41 = arith.constant 3 : index
    %c340_42 = arith.constant 340 : index
    %63 = vector.load %arg5[%c3_41, %c340_42] : memref<8x1156xf32, #tpu.memory_space<vmem>>, vector<3x34xf32>
    tpu.vector_store %arg5[%c3_41, %c340_42], %62 {strides = array<i32>} : memref<8x1156xf32, #tpu.memory_space<vmem>>, vector<3x34xf32>,
    %64 = vector.extract_strided_slice %4 {offsets = [33, 0], sizes = [3, 68], strides = [1, 1]} : vector<104x68xf32> to vector<3x68xf32>
    %65 = vector.extract_strided_slice %64 {offsets = [0, 0], sizes = [3, 34], strides = [1, 1]} : vector<3x68xf32> to vector<3x34xf32>
    %c0_43 = arith.constant 0 : index
    %c374 = arith.constant 374 : index
    %66 = vector.load %arg5[%c0_43, %c374] : memref<8x1156xf32, #tpu.memory_space<vmem>>, vector<3x34xf32>
    tpu.vector_store %arg5[%c0_43, %c374], %65 {strides = array<i32>} : memref<8x1156xf32, #tpu.memory_space<vmem>>, vector<3x34xf32>,
    %67 = vector.extract_strided_slice %64 {offsets = [0, 34], sizes = [3, 34], strides = [1, 1]} : vector<3x68xf32> to vector<3x34xf32>
    %c3_44 = arith.constant 3 : index
    %c374_45 = arith.constant 374 : index
    %68 = vector.load %arg5[%c3_44, %c374_45] : memref<8x1156xf32, #tpu.memory_space<vmem>>, vector<3x34xf32>
    tpu.vector_store %arg5[%c3_44, %c374_45], %67 {strides = array<i32>} : memref<8x1156xf32, #tpu.memory_space<vmem>>, vector<3x34xf32>,
    %69 = vector.extract_strided_slice %4 {offsets = [36, 0], sizes = [3, 68], strides = [1, 1]} : vector<104x68xf32> to vector<3x68xf32>
    %70 = vector.extract_strided_slice %69 {offsets = [0, 0], sizes = [3, 34], strides = [1, 1]} : vector<3x68xf32> to vector<3x34xf32>
    %c0_46 = arith.constant 0 : index
    %c408 = arith.constant 408 : index
    %71 = vector.load %arg5[%c0_46, %c408] : memref<8x1156xf32, #tpu.memory_space<vmem>>, vector<3x34xf32>
    tpu.vector_store %arg5[%c0_46, %c408], %70 {strides = array<i32>} : memref<8x1156xf32, #tpu.memory_space<vmem>>, vector<3x34xf32>,
    %72 = vector.extract_strided_slice %69 {offsets = [0, 34], sizes = [3, 34], strides = [1, 1]} : vector<3x68xf32> to vector<3x34xf32>
    %c3_47 = arith.constant 3 : index
    %c408_48 = arith.constant 408 : index
    %73 = vector.load %arg5[%c3_47, %c408_48] : memref<8x1156xf32, #tpu.memory_space<vmem>>, vector<3x34xf32>
    tpu.vector_store %arg5[%c3_47, %c408_48], %72 {strides = array<i32>} : memref<8x1156xf32, #tpu.memory_space<vmem>>, vector<3x34xf32>,
    %74 = vector.extract_strided_slice %4 {offsets = [39, 0], sizes = [3, 68], strides = [1, 1]} : vector<104x68xf32> to vector<3x68xf32>
    %75 = vector.extract_strided_slice %74 {offsets = [0, 0], sizes = [3, 34], strides = [1, 1]} : vector<3x68xf32> to vector<3x34xf32>
    %c0_49 = arith.constant 0 : index
    %c442 = arith.constant 442 : index
    %76 = vector.load %arg5[%c0_49, %c442] : memref<8x1156xf32, #tpu.memory_space<vmem>>, vector<3x34xf32>
    tpu.vector_store %arg5[%c0_49, %c442], %75 {strides = array<i32>} : memref<8x1156xf32, #tpu.memory_space<vmem>>, vector<3x34xf32>,
    %77 = vector.extract_strided_slice %74 {offsets = [0, 34], sizes = [3, 34], strides = [1, 1]} : vector<3x68xf32> to vector<3x34xf32>
    %c3_50 = arith.constant 3 : index
    %c442_51 = arith.constant 442 : index
    %78 = vector.load %arg5[%c3_50, %c442_51] : memref<8x1156xf32, #tpu.memory_space<vmem>>, vector<3x34xf32>
    tpu.vector_store %arg5[%c3_50, %c442_51], %77 {strides = array<i32>} : memref<8x1156xf32, #tpu.memory_space<vmem>>, vector<3x34xf32>,
    %79 = vector.extract_strided_slice %4 {offsets = [42, 0], sizes = [3, 68], strides = [1, 1]} : vector<104x68xf32> to vector<3x68xf32>
    %80 = vector.extract_strided_slice %79 {offsets = [0, 0], sizes = [3, 34], strides = [1, 1]} : vector<3x68xf32> to vector<3x34xf32>
    %c0_52 = arith.constant 0 : index
    %c476 = arith.constant 476 : index
    %81 = vector.load %arg5[%c0_52, %c476] : memref<8x1156xf32, #tpu.memory_space<vmem>>, vector<3x34xf32>
    tpu.vector_store %arg5[%c0_52, %c476], %80 {strides = array<i32>} : memref<8x1156xf32, #tpu.memory_space<vmem>>, vector<3x34xf32>,
    %82 = vector.extract_strided_slice %79 {offsets = [0, 34], sizes = [3, 34], strides = [1, 1]} : vector<3x68xf32> to vector<3x34xf32>
    %c3_53 = arith.constant 3 : index
    %c476_54 = arith.constant 476 : index
    %83 = vector.load %arg5[%c3_53, %c476_54] : memref<8x1156xf32, #tpu.memory_space<vmem>>, vector<3x34xf32>
    tpu.vector_store %arg5[%c3_53, %c476_54], %82 {strides = array<i32>} : memref<8x1156xf32, #tpu.memory_space<vmem>>, vector<3x34xf32>,
    %84 = vector.extract_strided_slice %4 {offsets = [45, 0], sizes = [3, 68], strides = [1, 1]} : vector<104x68xf32> to vector<3x68xf32>
    %85 = vector.extract_strided_slice %84 {offsets = [0, 0], sizes = [3, 34], strides = [1, 1]} : vector<3x68xf32> to vector<3x34xf32>
    %c0_55 = arith.constant 0 : index
    %c510 = arith.constant 510 : index
    %86 = vector.load %arg5[%c0_55, %c510] : memref<8x1156xf32, #tpu.memory_space<vmem>>, vector<3x34xf32>
    tpu.vector_store %arg5[%c0_55, %c510], %85 {strides = array<i32>} : memref<8x1156xf32, #tpu.memory_space<vmem>>, vector<3x34xf32>,
    %87 = vector.extract_strided_slice %84 {offsets = [0, 34], sizes = [3, 34], strides = [1, 1]} : vector<3x68xf32> to vector<3x34xf32>
    %c3_56 = arith.constant 3 : index
    %c510_57 = arith.constant 510 : index
    %88 = vector.load %arg5[%c3_56, %c510_57] : memref<8x1156xf32, #tpu.memory_space<vmem>>, vector<3x34xf32>
    tpu.vector_store %arg5[%c3_56, %c510_57], %87 {strides = array<i32>} : memref<8x1156xf32, #tpu.memory_space<vmem>>, vector<3x34xf32>,
    %89 = vector.extract_strided_slice %4 {offsets = [48, 0], sizes = [3, 68], strides = [1, 1]} : vector<104x68xf32> to vector<3x68xf32>
    %90 = vector.extract_strided_slice %89 {offsets = [0, 0], sizes = [3, 34], strides = [1, 1]} : vector<3x68xf32> to vector<3x34xf32>
    %c0_58 = arith.constant 0 : index
    %c544 = arith.constant 544 : index
    %91 = vector.load %arg5[%c0_58, %c544] : memref<8x1156xf32, #tpu.memory_space<vmem>>, vector<3x34xf32>
    tpu.vector_store %arg5[%c0_58, %c544], %90 {strides = array<i32>} : memref<8x1156xf32, #tpu.memory_space<vmem>>, vector<3x34xf32>,
    %92 = vector.extract_strided_slice %89 {offsets = [0, 34], sizes = [3, 34], strides = [1, 1]} : vector<3x68xf32> to vector<3x34xf32>
    %c3_59 = arith.constant 3 : index
    %c544_60 = arith.constant 544 : index
    %93 = vector.load %arg5[%c3_59, %c544_60] : memref<8x1156xf32, #tpu.memory_space<vmem>>, vector<3x34xf32>
    tpu.vector_store %arg5[%c3_59, %c544_60], %92 {strides = array<i32>} : memref<8x1156xf32, #tpu.memory_space<vmem>>, vector<3x34xf32>,
    %94 = vector.extract_strided_slice %4 {offsets = [51, 0], sizes = [3, 68], strides = [1, 1]} : vector<104x68xf32> to vector<3x68xf32>
    %95 = vector.extract_strided_slice %94 {offsets = [0, 0], sizes = [3, 34], strides = [1, 1]} : vector<3x68xf32> to vector<3x34xf32>
    %c0_61 = arith.constant 0 : index
    %c578 = arith.constant 578 : index
    %96 = vector.load %arg5[%c0_61, %c578] : memref<8x1156xf32, #tpu.memory_space<vmem>>, vector<3x34xf32>
    tpu.vector_store %arg5[%c0_61, %c578], %95 {strides = array<i32>} : memref<8x1156xf32, #tpu.memory_space<vmem>>, vector<3x34xf32>,
    %97 = vector.extract_strided_slice %94 {offsets = [0, 34], sizes = [3, 34], strides = [1, 1]} : vector<3x68xf32> to vector<3x34xf32>
    %c3_62 = arith.constant 3 : index
    %c578_63 = arith.constant 578 : index
    %98 = vector.load %arg5[%c3_62, %c578_63] : memref<8x1156xf32, #tpu.memory_space<vmem>>, vector<3x34xf32>
    tpu.vector_store %arg5[%c3_62, %c578_63], %97 {strides = array<i32>} : memref<8x1156xf32, #tpu.memory_space<vmem>>, vector<3x34xf32>,
    %99 = vector.extract_strided_slice %4 {offsets = [54, 0], sizes = [3, 68], strides = [1, 1]} : vector<104x68xf32> to vector<3x68xf32>
    %100 = vector.extract_strided_slice %99 {offsets = [0, 0], sizes = [3, 34], strides = [1, 1]} : vector<3x68xf32> to vector<3x34xf32>
    %c0_64 = arith.constant 0 : index
    %c612 = arith.constant 612 : index
    %101 = vector.load %arg5[%c0_64, %c612] : memref<8x1156xf32, #tpu.memory_space<vmem>>, vector<3x34xf32>
    tpu.vector_store %arg5[%c0_64, %c612], %100 {strides = array<i32>} : memref<8x1156xf32, #tpu.memory_space<vmem>>, vector<3x34xf32>,
    %102 = vector.extract_strided_slice %99 {offsets = [0, 34], sizes = [3, 34], strides = [1, 1]} : vector<3x68xf32> to vector<3x34xf32>
    %c3_65 = arith.constant 3 : index
    %c612_66 = arith.constant 612 : index
    %103 = vector.load %arg5[%c3_65, %c612_66] : memref<8x1156xf32, #tpu.memory_space<vmem>>, vector<3x34xf32>
    tpu.vector_store %arg5[%c3_65, %c612_66], %102 {strides = array<i32>} : memref<8x1156xf32, #tpu.memory_space<vmem>>, vector<3x34xf32>,
    %104 = vector.extract_strided_slice %4 {offsets = [57, 0], sizes = [3, 68], strides = [1, 1]} : vector<104x68xf32> to vector<3x68xf32>
    %105 = vector.extract_strided_slice %104 {offsets = [0, 0], sizes = [3, 34], strides = [1, 1]} : vector<3x68xf32> to vector<3x34xf32>
    %c0_67 = arith.constant 0 : index
    %c646 = arith.constant 646 : index
    %106 = vector.load %arg5[%c0_67, %c646] : memref<8x1156xf32, #tpu.memory_space<vmem>>, vector<3x34xf32>
    tpu.vector_store %arg5[%c0_67, %c646], %105 {strides = array<i32>} : memref<8x1156xf32, #tpu.memory_space<vmem>>, vector<3x34xf32>,
    %107 = vector.extract_strided_slice %104 {offsets = [0, 34], sizes = [3, 34], strides = [1, 1]} : vector<3x68xf32> to vector<3x34xf32>
    %c3_68 = arith.constant 3 : index
    %c646_69 = arith.constant 646 : index
    %108 = vector.load %arg5[%c3_68, %c646_69] : memref<8x1156xf32, #tpu.memory_space<vmem>>, vector<3x34xf32>
    tpu.vector_store %arg5[%c3_68, %c646_69], %107 {strides = array<i32>} : memref<8x1156xf32, #tpu.memory_space<vmem>>, vector<3x34xf32>,
    %109 = vector.extract_strided_slice %4 {offsets = [60, 0], sizes = [3, 68], strides = [1, 1]} : vector<104x68xf32> to vector<3x68xf32>
    %110 = vector.extract_strided_slice %109 {offsets = [0, 0], sizes = [3, 34], strides = [1, 1]} : vector<3x68xf32> to vector<3x34xf32>
    %c0_70 = arith.constant 0 : index
    %c680 = arith.constant 680 : index
    %111 = vector.load %arg5[%c0_70, %c680] : memref<8x1156xf32, #tpu.memory_space<vmem>>, vector<3x34xf32>
    tpu.vector_store %arg5[%c0_70, %c680], %110 {strides = array<i32>} : memref<8x1156xf32, #tpu.memory_space<vmem>>, vector<3x34xf32>,
    %112 = vector.extract_strided_slice %109 {offsets = [0, 34], sizes = [3, 34], strides = [1, 1]} : vector<3x68xf32> to vector<3x34xf32>
    %c3_71 = arith.constant 3 : index
    %c680_72 = arith.constant 680 : index
    %113 = vector.load %arg5[%c3_71, %c680_72] : memref<8x1156xf32, #tpu.memory_space<vmem>>, vector<3x34xf32>
    tpu.vector_store %arg5[%c3_71, %c680_72], %112 {strides = array<i32>} : memref<8x1156xf32, #tpu.memory_space<vmem>>, vector<3x34xf32>,
    %114 = vector.extract_strided_slice %4 {offsets = [63, 0], sizes = [3, 68], strides = [1, 1]} : vector<104x68xf32> to vector<3x68xf32>
    %115 = vector.extract_strided_slice %114 {offsets = [0, 0], sizes = [3, 34], strides = [1, 1]} : vector<3x68xf32> to vector<3x34xf32>
    %c0_73 = arith.constant 0 : index
    %c714 = arith.constant 714 : index
    %116 = vector.load %arg5[%c0_73, %c714] : memref<8x1156xf32, #tpu.memory_space<vmem>>, vector<3x34xf32>
    tpu.vector_store %arg5[%c0_73, %c714], %115 {strides = array<i32>} : memref<8x1156xf32, #tpu.memory_space<vmem>>, vector<3x34xf32>,
    %117 = vector.extract_strided_slice %114 {offsets = [0, 34], sizes = [3, 34], strides = [1, 1]} : vector<3x68xf32> to vector<3x34xf32>
    %c3_74 = arith.constant 3 : index
    %c714_75 = arith.constant 714 : index
    %118 = vector.load %arg5[%c3_74, %c714_75] : memref<8x1156xf32, #tpu.memory_space<vmem>>, vector<3x34xf32>
    tpu.vector_store %arg5[%c3_74, %c714_75], %117 {strides = array<i32>} : memref<8x1156xf32, #tpu.memory_space<vmem>>, vector<3x34xf32>,
    %119 = vector.extract_strided_slice %4 {offsets = [66, 0], sizes = [3, 68], strides = [1, 1]} : vector<104x68xf32> to vector<3x68xf32>
    %120 = vector.extract_strided_slice %119 {offsets = [0, 0], sizes = [3, 34], strides = [1, 1]} : vector<3x68xf32> to vector<3x34xf32>
    %c0_76 = arith.constant 0 : index
    %c748 = arith.constant 748 : index
    %121 = vector.load %arg5[%c0_76, %c748] : memref<8x1156xf32, #tpu.memory_space<vmem>>, vector<3x34xf32>
    tpu.vector_store %arg5[%c0_76, %c748], %120 {strides = array<i32>} : memref<8x1156xf32, #tpu.memory_space<vmem>>, vector<3x34xf32>,
    %122 = vector.extract_strided_slice %119 {offsets = [0, 34], sizes = [3, 34], strides = [1, 1]} : vector<3x68xf32> to vector<3x34xf32>
    %c3_77 = arith.constant 3 : index
    %c748_78 = arith.constant 748 : index
    %123 = vector.load %arg5[%c3_77, %c748_78] : memref<8x1156xf32, #tpu.memory_space<vmem>>, vector<3x34xf32>
    tpu.vector_store %arg5[%c3_77, %c748_78], %122 {strides = array<i32>} : memref<8x1156xf32, #tpu.memory_space<vmem>>, vector<3x34xf32>,
    %124 = vector.extract_strided_slice %4 {offsets = [69, 0], sizes = [3, 68], strides = [1, 1]} : vector<104x68xf32> to vector<3x68xf32>
    %125 = vector.extract_strided_slice %124 {offsets = [0, 0], sizes = [3, 34], strides = [1, 1]} : vector<3x68xf32> to vector<3x34xf32>
    %c0_79 = arith.constant 0 : index
    %c782 = arith.constant 782 : index
    %126 = vector.load %arg5[%c0_79, %c782] : memref<8x1156xf32, #tpu.memory_space<vmem>>, vector<3x34xf32>
    tpu.vector_store %arg5[%c0_79, %c782], %125 {strides = array<i32>} : memref<8x1156xf32, #tpu.memory_space<vmem>>, vector<3x34xf32>,
    %127 = vector.extract_strided_slice %124 {offsets = [0, 34], sizes = [3, 34], strides = [1, 1]} : vector<3x68xf32> to vector<3x34xf32>
    %c3_80 = arith.constant 3 : index
    %c782_81 = arith.constant 782 : index
    %128 = vector.load %arg5[%c3_80, %c782_81] : memref<8x1156xf32, #tpu.memory_space<vmem>>, vector<3x34xf32>
    tpu.vector_store %arg5[%c3_80, %c782_81], %127 {strides = array<i32>} : memref<8x1156xf32, #tpu.memory_space<vmem>>, vector<3x34xf32>,
    %129 = vector.extract_strided_slice %4 {offsets = [72, 0], sizes = [3, 68], strides = [1, 1]} : vector<104x68xf32> to vector<3x68xf32>
    %130 = vector.extract_strided_slice %129 {offsets = [0, 0], sizes = [3, 34], strides = [1, 1]} : vector<3x68xf32> to vector<3x34xf32>
    %c0_82 = arith.constant 0 : index
    %c816 = arith.constant 816 : index
    %131 = vector.load %arg5[%c0_82, %c816] : memref<8x1156xf32, #tpu.memory_space<vmem>>, vector<3x34xf32>
    tpu.vector_store %arg5[%c0_82, %c816], %130 {strides = array<i32>} : memref<8x1156xf32, #tpu.memory_space<vmem>>, vector<3x34xf32>,
    %132 = vector.extract_strided_slice %129 {offsets = [0, 34], sizes = [3, 34], strides = [1, 1]} : vector<3x68xf32> to vector<3x34xf32>
    %c3_83 = arith.constant 3 : index
    %c816_84 = arith.constant 816 : index
    %133 = vector.load %arg5[%c3_83, %c816_84] : memref<8x1156xf32, #tpu.memory_space<vmem>>, vector<3x34xf32>
    tpu.vector_store %arg5[%c3_83, %c816_84], %132 {strides = array<i32>} : memref<8x1156xf32, #tpu.memory_space<vmem>>, vector<3x34xf32>,
    %134 = vector.extract_strided_slice %4 {offsets = [75, 0], sizes = [3, 68], strides = [1, 1]} : vector<104x68xf32> to vector<3x68xf32>
    %135 = vector.extract_strided_slice %134 {offsets = [0, 0], sizes = [3, 34], strides = [1, 1]} : vector<3x68xf32> to vector<3x34xf32>
    %c0_85 = arith.constant 0 : index
    %c850 = arith.constant 850 : index
    %136 = vector.load %arg5[%c0_85, %c850] : memref<8x1156xf32, #tpu.memory_space<vmem>>, vector<3x34xf32>
    tpu.vector_store %arg5[%c0_85, %c850], %135 {strides = array<i32>} : memref<8x1156xf32, #tpu.memory_space<vmem>>, vector<3x34xf32>,
    %137 = vector.extract_strided_slice %134 {offsets = [0, 34], sizes = [3, 34], strides = [1, 1]} : vector<3x68xf32> to vector<3x34xf32>
    %c3_86 = arith.constant 3 : index
    %c850_87 = arith.constant 850 : index
    %138 = vector.load %arg5[%c3_86, %c850_87] : memref<8x1156xf32, #tpu.memory_space<vmem>>, vector<3x34xf32>
    tpu.vector_store %arg5[%c3_86, %c850_87], %137 {strides = array<i32>} : memref<8x1156xf32, #tpu.memory_space<vmem>>, vector<3x34xf32>,
    %139 = vector.extract_strided_slice %4 {offsets = [78, 0], sizes = [3, 68], strides = [1, 1]} : vector<104x68xf32> to vector<3x68xf32>
    %140 = vector.extract_strided_slice %139 {offsets = [0, 0], sizes = [3, 34], strides = [1, 1]} : vector<3x68xf32> to vector<3x34xf32>
    %c0_88 = arith.constant 0 : index
    %c884 = arith.constant 884 : index
    %141 = vector.load %arg5[%c0_88, %c884] : memref<8x1156xf32, #tpu.memory_space<vmem>>, vector<3x34xf32>
    tpu.vector_store %arg5[%c0_88, %c884], %140 {strides = array<i32>} : memref<8x1156xf32, #tpu.memory_space<vmem>>, vector<3x34xf32>,
    %142 = vector.extract_strided_slice %139 {offsets = [0, 34], sizes = [3, 34], strides = [1, 1]} : vector<3x68xf32> to vector<3x34xf32>
    %c3_89 = arith.constant 3 : index
    %c884_90 = arith.constant 884 : index
    %143 = vector.load %arg5[%c3_89, %c884_90] : memref<8x1156xf32, #tpu.memory_space<vmem>>, vector<3x34xf32>
    tpu.vector_store %arg5[%c3_89, %c884_90], %142 {strides = array<i32>} : memref<8x1156xf32, #tpu.memory_space<vmem>>, vector<3x34xf32>,
    %144 = vector.extract_strided_slice %4 {offsets = [81, 0], sizes = [3, 68], strides = [1, 1]} : vector<104x68xf32> to vector<3x68xf32>
    %145 = vector.extract_strided_slice %144 {offsets = [0, 0], sizes = [3, 34], strides = [1, 1]} : vector<3x68xf32> to vector<3x34xf32>
    %c0_91 = arith.constant 0 : index
    %c918 = arith.constant 918 : index
    %146 = vector.load %arg5[%c0_91, %c918] : memref<8x1156xf32, #tpu.memory_space<vmem>>, vector<3x34xf32>
    tpu.vector_store %arg5[%c0_91, %c918], %145 {strides = array<i32>} : memref<8x1156xf32, #tpu.memory_space<vmem>>, vector<3x34xf32>,
    %147 = vector.extract_strided_slice %144 {offsets = [0, 34], sizes = [3, 34], strides = [1, 1]} : vector<3x68xf32> to vector<3x34xf32>
    %c3_92 = arith.constant 3 : index
    %c918_93 = arith.constant 918 : index
    %148 = vector.load %arg5[%c3_92, %c918_93] : memref<8x1156xf32, #tpu.memory_space<vmem>>, vector<3x34xf32>
    tpu.vector_store %arg5[%c3_92, %c918_93], %147 {strides = array<i32>} : memref<8x1156xf32, #tpu.memory_space<vmem>>, vector<3x34xf32>,
    %149 = vector.extract_strided_slice %4 {offsets = [84, 0], sizes = [3, 68], strides = [1, 1]} : vector<104x68xf32> to vector<3x68xf32>
    %150 = vector.extract_strided_slice %149 {offsets = [0, 0], sizes = [3, 34], strides = [1, 1]} : vector<3x68xf32> to vector<3x34xf32>
    %c0_94 = arith.constant 0 : index
    %c952 = arith.constant 952 : index
    %151 = vector.load %arg5[%c0_94, %c952] : memref<8x1156xf32, #tpu.memory_space<vmem>>, vector<3x34xf32>
    tpu.vector_store %arg5[%c0_94, %c952], %150 {strides = array<i32>} : memref<8x1156xf32, #tpu.memory_space<vmem>>, vector<3x34xf32>,
    %152 = vector.extract_strided_slice %149 {offsets = [0, 34], sizes = [3, 34], strides = [1, 1]} : vector<3x68xf32> to vector<3x34xf32>
    %c3_95 = arith.constant 3 : index
    %c952_96 = arith.constant 952 : index
    %153 = vector.load %arg5[%c3_95, %c952_96] : memref<8x1156xf32, #tpu.memory_space<vmem>>, vector<3x34xf32>
    tpu.vector_store %arg5[%c3_95, %c952_96], %152 {strides = array<i32>} : memref<8x1156xf32, #tpu.memory_space<vmem>>, vector<3x34xf32>,
    %154 = vector.extract_strided_slice %4 {offsets = [87, 0], sizes = [3, 68], strides = [1, 1]} : vector<104x68xf32> to vector<3x68xf32>
    %155 = vector.extract_strided_slice %154 {offsets = [0, 0], sizes = [3, 34], strides = [1, 1]} : vector<3x68xf32> to vector<3x34xf32>
    %c0_97 = arith.constant 0 : index
    %c986 = arith.constant 986 : index
    %156 = vector.load %arg5[%c0_97, %c986] : memref<8x1156xf32, #tpu.memory_space<vmem>>, vector<3x34xf32>
    tpu.vector_store %arg5[%c0_97, %c986], %155 {strides = array<i32>} : memref<8x1156xf32, #tpu.memory_space<vmem>>, vector<3x34xf32>,
    %157 = vector.extract_strided_slice %154 {offsets = [0, 34], sizes = [3, 34], strides = [1, 1]} : vector<3x68xf32> to vector<3x34xf32>
    %c3_98 = arith.constant 3 : index
    %c986_99 = arith.constant 986 : index
    %158 = vector.load %arg5[%c3_98, %c986_99] : memref<8x1156xf32, #tpu.memory_space<vmem>>, vector<3x34xf32>
    tpu.vector_store %arg5[%c3_98, %c986_99], %157 {strides = array<i32>} : memref<8x1156xf32, #tpu.memory_space<vmem>>, vector<3x34xf32>,
    %159 = vector.extract_strided_slice %4 {offsets = [90, 0], sizes = [3, 68], strides = [1, 1]} : vector<104x68xf32> to vector<3x68xf32>
    %160 = vector.extract_strided_slice %159 {offsets = [0, 0], sizes = [3, 34], strides = [1, 1]} : vector<3x68xf32> to vector<3x34xf32>
    %c0_100 = arith.constant 0 : index
    %c1020 = arith.constant 1020 : index
    %161 = vector.load %arg5[%c0_100, %c1020] : memref<8x1156xf32, #tpu.memory_space<vmem>>, vector<3x34xf32>
    tpu.vector_store %arg5[%c0_100, %c1020], %160 {strides = array<i32>} : memref<8x1156xf32, #tpu.memory_space<vmem>>, vector<3x34xf32>,
    %162 = vector.extract_strided_slice %159 {offsets = [0, 34], sizes = [3, 34], strides = [1, 1]} : vector<3x68xf32> to vector<3x34xf32>
    %c3_101 = arith.constant 3 : index
    %c1020_102 = arith.constant 1020 : index
    %163 = vector.load %arg5[%c3_101, %c1020_102] : memref<8x1156xf32, #tpu.memory_space<vmem>>, vector<3x34xf32>
    tpu.vector_store %arg5[%c3_101, %c1020_102], %162 {strides = array<i32>} : memref<8x1156xf32, #tpu.memory_space<vmem>>, vector<3x34xf32>,
    %164 = vector.extract_strided_slice %4 {offsets = [93, 0], sizes = [3, 68], strides = [1, 1]} : vector<104x68xf32> to vector<3x68xf32>
    %165 = vector.extract_strided_slice %164 {offsets = [0, 0], sizes = [3, 34], strides = [1, 1]} : vector<3x68xf32> to vector<3x34xf32>
    %c0_103 = arith.constant 0 : index
    %c1054 = arith.constant 1054 : index
    %166 = vector.load %arg5[%c0_103, %c1054] : memref<8x1156xf32, #tpu.memory_space<vmem>>, vector<3x34xf32>
    tpu.vector_store %arg5[%c0_103, %c1054], %165 {strides = array<i32>} : memref<8x1156xf32, #tpu.memory_space<vmem>>, vector<3x34xf32>,
    %167 = vector.extract_strided_slice %164 {offsets = [0, 34], sizes = [3, 34], strides = [1, 1]} : vector<3x68xf32> to vector<3x34xf32>
    %c3_104 = arith.constant 3 : index
    %c1054_105 = arith.constant 1054 : index
    %168 = vector.load %arg5[%c3_104, %c1054_105] : memref<8x1156xf32, #tpu.memory_space<vmem>>, vector<3x34xf32>
    tpu.vector_store %arg5[%c3_104, %c1054_105], %167 {strides = array<i32>} : memref<8x1156xf32, #tpu.memory_space<vmem>>, vector<3x34xf32>,
    %169 = vector.extract_strided_slice %4 {offsets = [96, 0], sizes = [3, 68], strides = [1, 1]} : vector<104x68xf32> to vector<3x68xf32>
    %170 = vector.extract_strided_slice %169 {offsets = [0, 0], sizes = [3, 34], strides = [1, 1]} : vector<3x68xf32> to vector<3x34xf32>
    %c0_106 = arith.constant 0 : index
    %c1088 = arith.constant 1088 : index
    %171 = vector.load %arg5[%c0_106, %c1088] : memref<8x1156xf32, #tpu.memory_space<vmem>>, vector<3x34xf32>
    tpu.vector_store %arg5[%c0_106, %c1088], %170 {strides = array<i32>} : memref<8x1156xf32, #tpu.memory_space<vmem>>, vector<3x34xf32>,
    %172 = vector.extract_strided_slice %169 {offsets = [0, 34], sizes = [3, 34], strides = [1, 1]} : vector<3x68xf32> to vector<3x34xf32>
    %c3_107 = arith.constant 3 : index
    %c1088_108 = arith.constant 1088 : index
    %173 = vector.load %arg5[%c3_107, %c1088_108] : memref<8x1156xf32, #tpu.memory_space<vmem>>, vector<3x34xf32>
    tpu.vector_store %arg5[%c3_107, %c1088_108], %172 {strides = array<i32>} : memref<8x1156xf32, #tpu.memory_space<vmem>>, vector<3x34xf32>,
    %174 = vector.extract_strided_slice %4 {offsets = [99, 0], sizes = [3, 68], strides = [1, 1]} : vector<104x68xf32> to vector<3x68xf32>
    %175 = vector.extract_strided_slice %174 {offsets = [0, 0], sizes = [3, 34], strides = [1, 1]} : vector<3x68xf32> to vector<3x34xf32>
    %c0_109 = arith.constant 0 : index
    %c1122 = arith.constant 1122 : index
    %176 = vector.load %arg5[%c0_109, %c1122] : memref<8x1156xf32, #tpu.memory_space<vmem>>, vector<3x34xf32>
    tpu.vector_store %arg5[%c0_109, %c1122], %175 {strides = array<i32>} : memref<8x1156xf32, #tpu.memory_space<vmem>>, vector<3x34xf32>,
    %177 = vector.extract_strided_slice %174 {offsets = [0, 34], sizes = [3, 34], strides = [1, 1]} : vector<3x68xf32> to vector<3x34xf32>
    %c3_110 = arith.constant 3 : index
    %c1122_111 = arith.constant 1122 : index
    %178 = vector.load %arg5[%c3_110, %c1122_111] : memref<8x1156xf32, #tpu.memory_space<vmem>>, vector<3x34xf32>
    tpu.vector_store %arg5[%c3_110, %c1122_111], %177 {strides = array<i32>} : memref<8x1156xf32, #tpu.memory_space<vmem>>, vector<3x34xf32>,
    %c0_112 = arith.constant 0 : index
    %c0_113 = arith.constant 0 : index
    %179 = vector.load %arg3[%c0_112, %c0_113] : memref<16x8xf32, #tpu.memory_space<vmem>>, vector<16x8xf32>
    %c0_114 = arith.constant 0 : index
    %c0_115 = arith.constant 0 : index
    %180 = vector.load %arg5[%c0_114, %c0_115] : memref<8x1156xf32, #tpu.memory_space<vmem>>, vector<8x1156xf32>
    %cst_116 = arith.constant dense<0.000000e+00> : vector<16x1156xf32>
    %181 = tpu.matmul %179, %180, %cst_116 {dimension_numbers = #tpu.dot_dimension_numbers<[1], [0], [0], [1], [0, 0, 1, 1], [], []>} : vector<16x8xf32>, vector<8x1156xf32>, vector<16x1156xf32> -> vector<16x1156xf32>
    %182 = vector.extract_strided_slice %181 {offsets = [0, 0], sizes = [8, 1156], strides = [1, 1]} : vector<16x1156xf32> to vector<8x1156xf32>
    %183 = vector.extract_strided_slice %181 {offsets = [8, 0], sizes = [8, 1156], strides = [1, 1]} : vector<16x1156xf32> to vector<8x1156xf32>
    %184 = arith.mulf %182, %183 : vector<8x1156xf32>
    %c0_117 = arith.constant 0 : index
    %c0_118 = arith.constant 0 : index
    %185 = vector.load %arg4[%c0_117, %c0_118] : memref<8x1156xf32, #tpu.memory_space<vmem>>, vector<8x1156xf32>
    tpu.vector_store %arg4[%c0_117, %c0_118], %184 {strides = array<i32>} : memref<8x1156xf32, #tpu.memory_space<vmem>>, vector<8x1156xf32>,
    return
  }
}

</mosaic_0001>

<llo_original>
// kernel: forward.1
$region0: #{forward.1}
  #allocation0 [shape = 'u32[]', space=smem, size = 0x4, offset = 0x4, fixed_abs, tag = 'smem constant byte address 0x4 - core index']
  #allocation1 [shape = 'u32[144,128]{1,0:T(1,128)}', space=vmem, size = 0x12000, scoped, tag = 'internal scratch']
  #allocation2 [shape = 'f32[8,1156]{1,0:T(8,128)}', space=vmem, size = 0xa000, scoped, tag = 'scratch operand']
  %s0 = inlined_call_operand.vmem [shape: f32[192,128], index: 0, kind: input, shape index: {}]
  %s1 = inlined_call_operand.vmem [shape: f32[104,192], index: 1, kind: input, shape index: {}]
  %s2 = inlined_call_operand.vmem [shape: f32[128,68], index: 2, kind: input, shape index: {}]
  %s3 = inlined_call_operand.vmem [shape: f32[16,8], index: 3, kind: input, shape index: {}]
  %s4 = inlined_call_operand.vmem [shape: f32[8,1156], index: 4, kind: output, shape index: {}]
  %s5 = sld [smem:[#allocation0]]
  $region26: #{forward.1} parent=0
    _
  %s7 = ssub.s32 1, %s5
  %s8 = scalar_select 0, %s7, %s5
  // Predicated region
  $region2: #{forward.1} parent=0 // pred_check
    _
  $region3: #{forward.1} parent=0 // pred_check_branch
    %10 = sbr.rel (0) target = $region5
  $region4: #{forward.1} parent=0 // pred_region
    _
  $region5: #{forward.1} parent=0 // pred_fallthru
    _
  // Predicated region
  $region6: #{forward.1} parent=0 // pred_check
    _
  $region7: #{forward.1} parent=0 // pred_check_branch
    %12 = sbr.rel (0) target = $region9
  $region8: #{forward.1} parent=0 // pred_region
    _
  $region9: #{forward.1} parent=0 // pred_fallthru
    _
  // Predicated region
  $region10: #{forward.1} parent=0 // pred_check
    _
  $region11: #{forward.1} parent=0 // pred_check_branch
    %14 = sbr.rel (0) target = $region13
  $region12: #{forward.1} parent=0 // pred_region
    _
  $region13: #{forward.1} parent=0 // pred_fallthru
    _
  // Predicated region
  $region14: #{forward.1} parent=0 // pred_check
    _
  $region15: #{forward.1} parent=0 // pred_check_branch
    %16 = sbr.rel (0) target = $region17
  $region16: #{forward.1} parent=0 // pred_region
    _
  $region17: #{forward.1} parent=0 // pred_fallthru
    _
  %v17 = vld [vmem:[%s1] sm:$0xff]
  %v18 = vld [vmem:[%s1 + $0x8] sm:$0xff]
  %v19 = vld [vmem:[%s1 + $0x10] sm:$0xff]
  %v20 = vld [vmem:[%s1 + $0x18] sm:$0xff]
  %v21 = vld [vmem:[%s1 + $0x20] sm:$0xff]
  %v22 = vld [vmem:[%s1 + $0x28] sm:$0xff]
  %v23 = vld [vmem:[%s1 + $0x30] sm:$0xff]
  %v24 = vld [vmem:[%s1 + $0x38] sm:$0xff]
  %v25 = vld [vmem:[%s1 + $0x40] sm:$0xff]
  %v26 = vld [vmem:[%s1 + $0x48] sm:$0xff]
  %v27 = vld [vmem:[%s1 + $0x50] sm:$0xff]
  %v28 = vld [vmem:[%s1 + $0x58] sm:$0xff]
  %v29 = vld [vmem:[%s1 + $0x60] sm:$0xff]
  %v30 = vld [vmem:[%s1 + $0x68] sm:$0xff]
  %v31 = vld [vmem:[%s1 + $0x70] sm:$0xff]
  %v32 = vld [vmem:[%s1 + $0x78] sm:$0xff]
  %v33 = vld [vmem:[%s1 + $0x80] sm:$0xff]
  %v34 = vld [vmem:[%s1 + $0x88] sm:$0xff]
  %v35 = vld [vmem:[%s1 + $0x90] sm:$0xff]
  %v36 = vld [vmem:[%s1 + $0x98] sm:$0xff]
  %v37 = vld [vmem:[%s1 + $0xa0] sm:$0xff]
  %v38 = vld [vmem:[%s1 + $0xa8] sm:$0xff]
  %v39 = vld [vmem:[%s1 + $0xb0] sm:$0xff]
  %v40 = vld [vmem:[%s1 + $0xb8] sm:$0xff]
  %v41 = vld [vmem:[%s1 + $0xc0] sm:$0xff]
  %v42 = vld [vmem:[%s1 + $0xc8] sm:$0xff]
  %v43 = vld [vmem:[%s0] sm:$0xff]
  %v44 = vld [vmem:[%s0 + $0x8] sm:$0xff]
  %v45 = vld [vmem:[%s0 + $0x10] sm:$0xff]
  %v46 = vld [vmem:[%s0 + $0x18] sm:$0xff]
  %v47 = vld [vmem:[%s0 + $0x20] sm:$0xff]
  %v48 = vld [vmem:[%s0 + $0x28] sm:$0xff]
  %v49 = vld [vmem:[%s0 + $0x30] sm:$0xff]
  %v50 = vld [vmem:[%s0 + $0x38] sm:$0xff]
  %v51 = vld [vmem:[%s0 + $0x40] sm:$0xff]
  %v52 = vld [vmem:[%s0 + $0x48] sm:$0xff]
  %v53 = vld [vmem:[%s0 + $0x50] sm:$0xff]
  %v54 = vld [vmem:[%s0 + $0x58] sm:$0xff]
  %v55 = vld [vmem:[%s0 + $0x60] sm:$0xff]
  %v56 = vld [vmem:[%s0 + $0x68] sm:$0xff]
  %v57 = vld [vmem:[%s0 + $0x70] sm:$0xff]
  %v58 = vld [vmem:[%s0 + $0x78] sm:$0xff]
  %v59 = vld [vmem:[%s0 + $0x80] sm:$0xff]
  %v60 = vld [vmem:[%s0 + $0x88] sm:$0xff]
  %v61 = vld [vmem:[%s0 + $0x90] sm:$0xff]
  %v62 = vld [vmem:[%s0 + $0x98] sm:$0xff]
  %v63 = vld [vmem:[%s0 + $0xa0] sm:$0xff]
  %v64 = vld [vmem:[%s0 + $0xa8] sm:$0xff]
  %v65 = vld [vmem:[%s0 + $0xb0] sm:$0xff]
  %v66 = vld [vmem:[%s0 + $0xb8] sm:$0xff]
  %vm67 = vcmask 523264
  %v69 = vsel %vm67, %v18, 0
  %v72 = vsel %vm67, %v20, 0
  %v75 = vsel %vm67, %v22, 0
  %v78 = vsel %vm67, %v24, 0
  %v81 = vsel %vm67, %v26, 0
  %v84 = vsel %vm67, %v28, 0
  %v87 = vsel %vm67, %v30, 0
  %v90 = vsel %vm67, %v32, 0
  %v93 = vsel %vm67, %v34, 0
  %v96 = vsel %vm67, %v36, 0
  %v99 = vsel %vm67, %v38, 0
  %v102 = vsel %vm67, %v40, 0
  %v105 = vsel %vm67, %v42, 0
  %107 = vmatprep.subr.mxu0 0.0
  %108 = vmatpush1.msra.mxu0 %v43
  %109 = vmatprep.subr.mxu0 0.0
  %110 = vmatpush1.msra.mxu0 %v44
  %111 = vmatprep.subr.mxu0 0.0
  %112 = vmatpush1.msra.mxu0 %v45
  %113 = vmatprep.subr.mxu0 0.0
  %114 = vmatpush1.msra.mxu0 %v46
  %115 = vmatprep.subr.mxu0 0.0
  %116 = vmatpush1.msra.mxu0 %v47
  %117 = vmatprep.subr.mxu0 0.0
  %118 = vmatpush1.msra.mxu0 %v48
  %119 = vmatprep.subr.mxu0 0.0
  %120 = vmatpush1.msra.mxu0 %v49
  %121 = vmatprep.subr.mxu0 0.0
  %122 = vmatpush1.msra.mxu0 %v50
  %123 = vmatprep.subr.mxu0 0.0
  %124 = vmatpush1.msra.mxu0 %v51
  %125 = vmatprep.subr.mxu0 0.0
  %126 = vmatpush1.msra.mxu0 %v52
  %127 = vmatprep.subr.mxu0 0.0
  %128 = vmatpush1.msra.mxu0 %v53
  %129 = vmatprep.subr.mxu0 0.0
  %130 = vmatpush1.msra.mxu0 %v54
  %131 = vmatprep.subr.mxu0 0.0
  %132 = vmatpush1.msra.mxu0 %v55
  %133 = vmatprep.subr.mxu0 0.0
  %134 = vmatpush1.msra.mxu0 %v56
  %135 = vmatprep.subr.mxu0 0.0
  %136 = vmatpush1.msra.mxu0 %v57
  %137 = vmatprep.subr.mxu0 0.0
  %138 = vmatpush1.msra.mxu0 %v58
  %139 = vmatprep.subr.mxu0 0.0
  %140 = vmatpush1.msra.mxu0 %v59
  %141 = vmatprep.subr.mxu0 0.0
  %142 = vmatpush1.msra.mxu0 %v60
  %143 = vmatprep.subr.mxu0 0.0
  %144 = vmatpush1.msra.mxu0 %v61
  %145 = vmatprep.subr.mxu0 0.0
  %146 = vmatpush1.msra.mxu0 %v62
  %147 = vmatprep.subr.mxu0 0.0
  %148 = vmatpush1.msra.mxu0 %v63
  %149 = vmatprep.subr.mxu0 0.0
  %150 = vmatpush1.msra.mxu0 %v64
  %151 = vmatprep.subr.mxu0 0.0
  %152 = vmatpush1.msra.mxu0 %v65
  %153 = vmatprep.subr.mxu0 0.0
  %154 = vmatpush1.msra.mxu0 %v66
  %155 = vmatprep.subr.mxu0 0.0
  %156 = vmatpush1.msra.mxu0 0.0
  %157 = vmatprep.subr.mxu0 0.0
  %158 = vmatpush1.msra.mxu0 0.0
  %159 = vmatprep.subr.mxu0 0.0
  %160 = vmatpush1.msra.mxu0 0.0
  %161 = vmatprep.subr.mxu0 0.0
  %162 = vmatpush1.msra.mxu0 0.0
  %163 = vmatprep.subr.mxu0 0.0
  %164 = vmatpush1.msra.mxu0 0.0
  %165 = vmatprep.subr.mxu0 0.0
  %166 = vmatpush1.msra.mxu0 0.0
  %167 = vmatprep.subr.mxu0 0.0
  %168 = vmatpush1.msra.mxu0 0.0
  %169 = vmatprep.subr.mxu0 0.0
  %170 = vmatpush1.msra.mxu0 0.0
  %171 = vmatprep.mubr.f32.mxu0 %v69
  %172 = vmatmul.mubr.f32.gmra.mrb[0].mxu0 %v17
  %v173 = vpop.f32.mrb[0].mxu0
  %v174 = vadd.f32 0.0, %v173
  %v175 = vpop.f32.mrb[0].mxu0
  %176 = vmatprep.mubr.f32.mxu0 %v72
  %177 = vmatmul.mubr.f32.gmra.mrb[0].mxu0 %v19
  %v178 = vpop.f32.mrb[0].mxu0
  %v179 = vadd.f32 0.0, %v178
  %v180 = vpop.f32.mrb[0].mxu0
  %181 = vmatprep.mubr.f32.mxu0 %v75
  %182 = vmatmul.mubr.f32.gmra.mrb[0].mxu0 %v21
  %v183 = vpop.f32.mrb[0].mxu0
  %v184 = vadd.f32 0.0, %v183
  %v185 = vpop.f32.mrb[0].mxu0
  %186 = vmatprep.mubr.f32.mxu0 %v78
  %187 = vmatmul.mubr.f32.gmra.mrb[0].mxu0 %v23
  %v188 = vpop.f32.mrb[0].mxu0
  %v189 = vadd.f32 0.0, %v188
  %v190 = vpop.f32.mrb[0].mxu0
  %191 = vmatprep.mubr.f32.mxu0 %v81
  %192 = vmatmul.mubr.f32.gmra.mrb[0].mxu0 %v25
  %v193 = vpop.f32.mrb[0].mxu0
  %v194 = vadd.f32 0.0, %v193
  %v195 = vpop.f32.mrb[0].mxu0
  %196 = vmatprep.mubr.f32.mxu0 %v84
  %197 = vmatmul.mubr.f32.gmra.mrb[0].mxu0 %v27
  %v198 = vpop.f32.mrb[0].mxu0
  %v199 = vadd.f32 0.0, %v198
  %v200 = vpop.f32.mrb[0].mxu0
  %201 = vmatprep.mubr.f32.mxu0 %v87
  %202 = vmatmul.mubr.f32.gmra.mrb[0].mxu0 %v29
  %v203 = vpop.f32.mrb[0].mxu0
  %v204 = vadd.f32 0.0, %v203
  %v205 = vpop.f32.mrb[0].mxu0
  %206 = vmatprep.mubr.f32.mxu0 %v90
  %207 = vmatmul.mubr.f32.gmra.mrb[0].mxu0 %v31
  %v208 = vpop.f32.mrb[0].mxu0
  %v209 = vadd.f32 0.0, %v208
  %v210 = vpop.f32.mrb[0].mxu0
  %211 = vmatprep.mubr.f32.mxu0 %v93
  %212 = vmatmul.mubr.f32.gmra.mrb[0].mxu0 %v33
  %v213 = vpop.f32.mrb[0].mxu0
  %v214 = vadd.f32 0.0, %v213
  %v215 = vpop.f32.mrb[0].mxu0
  %216 = vmatprep.mubr.f32.mxu0 %v96
  %217 = vmatmul.mubr.f32.gmra.mrb[0].mxu0 %v35
  %v218 = vpop.f32.mrb[0].mxu0
  %v219 = vadd.f32 0.0, %v218
  %v220 = vpop.f32.mrb[0].mxu0
  %221 = vmatprep.mubr.f32.mxu0 %v99
  %222 = vmatmul.mubr.f32.gmra.mrb[0].mxu0 %v37
  %v223 = vpop.f32.mrb[0].mxu0
  %v224 = vadd.f32 0.0, %v223
  %v225 = vpop.f32.mrb[0].mxu0
  %226 = vmatprep.mubr.f32.mxu0 %v102
  %227 = vmatmul.mubr.f32.gmra.mrb[0].mxu0 %v39
  %v228 = vpop.f32.mrb[0].mxu0
  %v229 = vadd.f32 0.0, %v228
  %v230 = vpop.f32.mrb[0].mxu0
  %231 = vmatprep.mubr.f32.mxu0 %v105
  %232 = vmatmul.mubr.f32.gmra.mrb[0].mxu0 %v41
  %v233 = vpop.f32.mrb[0].mxu0
  %v234 = vadd.f32 0.0, %v233
  %v235 = vpop.f32.mrb[0].mxu0
  %236 = vdwg.mxu0
  %v237 = vld [vmem:[%s2] sm:$0xff]
  %v238 = vld [vmem:[%s2 + $0x8] sm:$0xff]
  %v239 = vld [vmem:[%s2 + $0x10] sm:$0xff]
  %v240 = vld [vmem:[%s2 + $0x18] sm:$0xff]
  %v241 = vld [vmem:[%s2 + $0x20] sm:$0xff]
  %v242 = vld [vmem:[%s2 + $0x28] sm:$0xff]
  %v243 = vld [vmem:[%s2 + $0x30] sm:$0xff]
  %v244 = vld [vmem:[%s2 + $0x38] sm:$0xff]
  %v245 = vld [vmem:[%s2 + $0x40] sm:$0xff]
  %v246 = vld [vmem:[%s2 + $0x48] sm:$0xff]
  %v247 = vld [vmem:[%s2 + $0x50] sm:$0xff]
  %v248 = vld [vmem:[%s2 + $0x58] sm:$0xff]
  %v249 = vld [vmem:[%s2 + $0x60] sm:$0xff]
  %v250 = vld [vmem:[%s2 + $0x68] sm:$0xff]
  %v251 = vld [vmem:[%s2 + $0x70] sm:$0xff]
  %v252 = vld [vmem:[%s2 + $0x78] sm:$0xff]
  %253 = vmatprep.subr.mxu0 0.0
  %254 = vmatpush1.msra.mxu0 %v237
  %255 = vmatprep.subr.mxu0 0.0
  %256 = vmatpush1.msra.mxu0 %v238
  %257 = vmatprep.subr.mxu0 0.0
  %258 = vmatpush1.msra.mxu0 %v239
  %259 = vmatprep.subr.mxu0 0.0
  %260 = vmatpush1.msra.mxu0 %v240
  %261 = vmatprep.subr.mxu0 0.0
  %262 = vmatpush1.msra.mxu0 %v241
  %263 = vmatprep.subr.mxu0 0.0
  %264 = vmatpush1.msra.mxu0 %v242
  %265 = vmatprep.subr.mxu0 0.0
  %266 = vmatpush1.msra.mxu0 %v243
  %267 = vmatprep.subr.mxu0 0.0
  %268 = vmatpush1.msra.mxu0 %v244
  %269 = vmatprep.subr.mxu0 0.0
  %270 = vmatpush1.msra.mxu0 %v245
  %271 = vmatprep.subr.mxu0 0.0
  %272 = vmatpush1.msra.mxu0 %v246
  %273 = vmatprep.subr.mxu0 0.0
  %274 = vmatpush1.msra.mxu0 %v247
  %275 = vmatprep.subr.mxu0 0.0
  %276 = vmatpush1.msra.mxu0 %v248
  %277 = vmatprep.subr.mxu0 0.0
  %278 = vmatpush1.msra.mxu0 %v249
  %279 = vmatprep.subr.mxu0 0.0
  %280 = vmatpush1.msra.mxu0 %v250
  %281 = vmatprep.subr.mxu0 0.0
  %282 = vmatpush1.msra.mxu0 %v251
  %283 = vmatprep.subr.mxu0 0.0
  %284 = vmatpush1.msra.mxu0 %v252
  %285 = vmatprep.subr.mxu0 0.0
  %286 = vmatpush1.msra.mxu0 0.0
  %287 = vmatprep.subr.mxu0 0.0
  %288 = vmatpush1.msra.mxu0 0.0
  %289 = vmatprep.subr.mxu0 0.0
  %290 = vmatpush1.msra.mxu0 0.0
  %291 = vmatprep.subr.mxu0 0.0
  %292 = vmatpush1.msra.mxu0 0.0
  %293 = vmatprep.subr.mxu0 0.0
  %294 = vmatpush1.msra.mxu0 0.0
  %295 = vmatprep.subr.mxu0 0.0
  %296 = vmatpush1.msra.mxu0 0.0
  %297 = vmatprep.subr.mxu0 0.0
  %298 = vmatpush1.msra.mxu0 0.0
  %299 = vmatprep.subr.mxu0 0.0
  %300 = vmatpush1.msra.mxu0 0.0
  %301 = vmatprep.subr.mxu0 0.0
  %302 = vmatpush1.msra.mxu0 0.0
  %303 = vmatprep.subr.mxu0 0.0
  %304 = vmatpush1.msra.mxu0 0.0
  %305 = vmatprep.subr.mxu0 0.0
  %306 = vmatpush1.msra.mxu0 0.0
  %307 = vmatprep.subr.mxu0 0.0
  %308 = vmatpush1.msra.mxu0 0.0
  %309 = vmatprep.subr.mxu0 0.0
  %310 = vmatpush1.msra.mxu0 0.0
  %311 = vmatprep.subr.mxu0 0.0
  %312 = vmatpush1.msra.mxu0 0.0
  %313 = vmatprep.subr.mxu0 0.0
  %314 = vmatpush1.msra.mxu0 0.0
  %315 = vmatprep.subr.mxu0 0.0
  %316 = vmatpush1.msra.mxu0 0.0
  %317 = vmatprep.mubr.f32.mxu0 0.0
  %318 = vmatmul.mubr.f32.gmra.mrb[0].mxu0 %v174
  %v319 = vpop.f32.mrb[0].mxu0
  %v320 = vadd.f32 0.0, %v319
  %v321 = vpop.f32.mrb[0].mxu0
  %322 = vmatprep.mubr.f32.mxu0 0.0
  %323 = vmatmul.mubr.f32.gmra.mrb[0].mxu0 %v179
  %v324 = vpop.f32.mrb[0].mxu0
  %v325 = vadd.f32 0.0, %v324
  %v326 = vpop.f32.mrb[0].mxu0
  %327 = vmatprep.mubr.f32.mxu0 0.0
  %328 = vmatmul.mubr.f32.gmra.mrb[0].mxu0 %v184
  %v329 = vpop.f32.mrb[0].mxu0
  %v330 = vadd.f32 0.0, %v329
  %v331 = vpop.f32.mrb[0].mxu0
  %332 = vmatprep.mubr.f32.mxu0 0.0
  %333 = vmatmul.mubr.f32.gmra.mrb[0].mxu0 %v189
  %v334 = vpop.f32.mrb[0].mxu0
  %v335 = vadd.f32 0.0, %v334
  %v336 = vpop.f32.mrb[0].mxu0
  %337 = vmatprep.mubr.f32.mxu0 0.0
  %338 = vmatmul.mubr.f32.gmra.mrb[0].mxu0 %v194
  %v339 = vpop.f32.mrb[0].mxu0
  %v340 = vadd.f32 0.0, %v339
  %v341 = vpop.f32.mrb[0].mxu0
  %342 = vmatprep.mubr.f32.mxu0 0.0
  %343 = vmatmul.mubr.f32.gmra.mrb[0].mxu0 %v199
  %v344 = vpop.f32.mrb[0].mxu0
  %v345 = vadd.f32 0.0, %v344
  %v346 = vpop.f32.mrb[0].mxu0
  %347 = vmatprep.mubr.f32.mxu0 0.0
  %348 = vmatmul.mubr.f32.gmra.mrb[0].mxu0 %v204
  %v349 = vpop.f32.mrb[0].mxu0
  %v350 = vadd.f32 0.0, %v349
  %v351 = vpop.f32.mrb[0].mxu0
  %352 = vmatprep.mubr.f32.mxu0 0.0
  %353 = vmatmul.mubr.f32.gmra.mrb[0].mxu0 %v209
  %v354 = vpop.f32.mrb[0].mxu0
  %v355 = vadd.f32 0.0, %v354
  %v356 = vpop.f32.mrb[0].mxu0
  %357 = vmatprep.mubr.f32.mxu0 0.0
  %358 = vmatmul.mubr.f32.gmra.mrb[0].mxu0 %v214
  %v359 = vpop.f32.mrb[0].mxu0
  %v360 = vadd.f32 0.0, %v359
  %v361 = vpop.f32.mrb[0].mxu0
  %362 = vmatprep.mubr.f32.mxu0 0.0
  %363 = vmatmul.mubr.f32.gmra.mrb[0].mxu0 %v219
  %v364 = vpop.f32.mrb[0].mxu0
  %v365 = vadd.f32 0.0, %v364
  %v366 = vpop.f32.mrb[0].mxu0
  %367 = vmatprep.mubr.f32.mxu0 0.0
  %368 = vmatmul.mubr.f32.gmra.mrb[0].mxu0 %v224
  %v369 = vpop.f32.mrb[0].mxu0
  %v370 = vadd.f32 0.0, %v369
  %v371 = vpop.f32.mrb[0].mxu0
  %372 = vmatprep.mubr.f32.mxu0 0.0
  %373 = vmatmul.mubr.f32.gmra.mrb[0].mxu0 %v229
  %v374 = vpop.f32.mrb[0].mxu0
  %v375 = vadd.f32 0.0, %v374
  %v376 = vpop.f32.mrb[0].mxu0
  %377 = vmatprep.mubr.f32.mxu0 0.0
  %378 = vmatmul.mubr.f32.gmra.mrb[0].mxu0 %v234
  %v379 = vpop.f32.mrb[0].mxu0
  %v380 = vadd.f32 0.0, %v379
  %v381 = vpop.f32.mrb[0].mxu0
  %382 = vdwg.mxu0
  %s383 = scalar_lea.vmem [#allocation2], 6
  %384 = vst [vmem:[%s383] ss:$8 sm:$0xf] 1.0
  %385 = vst [vmem:[%s383] ss:$8 sm:$0xf0] 1.0
  %v386 = vlaneseq
  %vm387 = vcmp.ge.s32.totalorder %v386, 0
  %vm388 = vcmp.lt.s32.totalorder %v386, 132
  %vm389 = vmand %vm387, %vm388
  %s390 = scalar_lea.vmem [#allocation2], 70
  %391 = vst.msk [vmem:[%s390] ss:$8 sm:$0x3] %vm389, 1.0
  %392 = vst.msk [vmem:[%s390] ss:$8 sm:$0x0] %vm389, 1.0
  %s393 = scalar_lea.vmem [#allocation2], 7
  %394 = vst [vmem:[%s393] ss:$8 sm:$0xf] 0.0
  %395 = vst [vmem:[%s393] ss:$8 sm:$0xf0] 0.0
  %s396 = scalar_lea.vmem [#allocation2], 71
  %397 = vst.msk [vmem:[%s396] ss:$8 sm:$0x3] %vm389, 0.0
  %398 = vst.msk [vmem:[%s396] ss:$8 sm:$0x0] %vm389, 0.0
  %vm399 = vcmask 272384
  %400 = vst.msk [vmem:[#allocation2] sm:$0x7] %vm399, %v320
  %v402 = vrot.slane %v320, 5
  %403 = vrot.lane.b32.xlu0 %v402, 94
  %v404 = vpop.permute.xlu0 %403
  %vm406 = vcmask 275459
  %407 = vst.msk [vmem:[#allocation2] sm:$0x38] %vm406, %v404
  %v408 = vrot.slane %v320, 3
  %409 = vrot.lane.b32.xlu0 %v408, 34
  %v410 = vpop.permute.xlu0 %409
  %vm412 = vcmask 551184
  %413 = vst.msk [vmem:[#allocation2] sm:$0x7] %vm412, %v410
  %vm414 = vcmask 554259
  %415 = vst.msk [vmem:[#allocation2] sm:$0x38] %vm414, %v320
  %vm417 = vcmask 1041408
  %v418 = vrot.slane %v320, 6
  %v419 = vrot.slane %v325, 6
  %v420 = vsel %vm417, %v418, %v419
  %421 = vrot.lane.b32.xlu0 %v420, 68
  %v422 = vpop.permute.xlu0 %421
  %vm424 = vcmask 829984
  %425 = vst.msk [vmem:[#allocation2] sm:$0x7] %vm424, %v422
  %vm426 = vcmask 1044480
  %v427 = vrot.slane %v325, 3
  %v428 = vsel %vm426, %v408, %v427
  %429 = vrot.lane.b32.xlu0 %v428, 34
  %v430 = vpop.permute.xlu0 %429
  %vm432 = vcmask 833059
  %433 = vst.msk [vmem:[#allocation2] sm:$0x38] %vm432, %v430
  %v434 = vrot.slane %v325, 1
  %435 = vrot.lane.b32.xlu0 %v434, 102
  %v436 = vpop.permute.xlu0 %435
  %vm438 = vcmask 1043248
  %439 = vst.msk [vmem:[#allocation2] sm:$0x7] %vm438, %v436
  %vm440 = vcmask 59392
  %441 = vst.msk [vmem:[#allocation2 + $0x8] sm:$0x7] %vm440, %v436
  %442 = vrot.lane.b32.xlu0 %v419, 68
  %v443 = vpop.permute.xlu0 %442
  %vm445 = vcmask 1046323
  %446 = vst.msk [vmem:[#allocation2] sm:$0x38] %vm445, %v443
  %vm447 = vcmask 62467
  %448 = vst.msk [vmem:[#allocation2 + $0x8] sm:$0x38] %vm447, %v443
  %v449 = vrot.slane %v325, 4
  %450 = vrot.lane.b32.xlu0 %v449, 8
  %v451 = vpop.permute.xlu0 %450
  %vm453 = vcmask 337984
  %454 = vst.msk [vmem:[#allocation2 + $0x8] sm:$0x7] %vm453, %v451
  %vm455 = vcmask 341059
  %456 = vst.msk [vmem:[#allocation2 + $0x8] sm:$0x38] %vm455, %v436
  %vm458 = vcmask 1040384
  %v459 = vrot.slane %v325, 7
  %v460 = vrot.slane %v330, 7
  %v461 = vsel %vm458, %v459, %v460
  %462 = vrot.lane.b32.xlu0 %v461, 42
  %v463 = vpop.permute.xlu0 %462
  %vm465 = vcmask 616784
  %466 = vst.msk [vmem:[#allocation2 + $0x8] sm:$0x7] %vm465, %v463
  %vm467 = vcmask 1043456
  %v468 = vrot.slane %v330, 4
  %v469 = vsel %vm467, %v449, %v468
  %470 = vrot.lane.b32.xlu0 %v469, 8
  %v471 = vpop.permute.xlu0 %470
  %vm473 = vcmask 619859
  %474 = vst.msk [vmem:[#allocation2 + $0x8] sm:$0x38] %vm473, %v471
  %v475 = vrot.slane %v330, 2
  %476 = vrot.lane.b32.xlu0 %v475, 76
  %v477 = vpop.permute.xlu0 %476
  %vm479 = vcmask 895584
  %480 = vst.msk [vmem:[#allocation2 + $0x8] sm:$0x7] %vm479, %v477
  %481 = vrot.lane.b32.xlu0 %v460, 42
  %v482 = vpop.permute.xlu0 %481
  %vm484 = vcmask 898659
  %485 = vst.msk [vmem:[#allocation2 + $0x8] sm:$0x38] %vm484, %v482
  %v486 = vrot.slane %v330, 5
  %487 = vrot.lane.b32.xlu0 %v486, 110
  %v488 = vpop.permute.xlu0 %487
  %vm490 = vcmask 1043312
  %491 = vst.msk [vmem:[#allocation2 + $0x8] sm:$0x7] %vm490, %v488
  %vm492 = vcmask 124928
  %493 = vst.msk [vmem:[#allocation2 + $0x10] sm:$0x7] %vm492, %v488
  %vm494 = vcmask 1046387
  %495 = vst.msk [vmem:[#allocation2 + $0x8] sm:$0x38] %vm494, %v477
  %vm496 = vcmask 128003
  %497 = vst.msk [vmem:[#allocation2 + $0x10] sm:$0x38] %vm496, %v477
  %499 = vrot.lane.b32.xlu0 %v335, 16
  %v500 = vpop.permute.xlu0 %499
  %vm502 = vcmask 403584
  %503 = vst.msk [vmem:[#allocation2 + $0x10] sm:$0x7] %vm502, %v500
  %v504 = vrot.slane %v335, 5
  %505 = vrot.lane.b32.xlu0 %v504, 110
  %v506 = vpop.permute.xlu0 %505
  %vm508 = vcmask 406659
  %509 = vst.msk [vmem:[#allocation2 + $0x10] sm:$0x38] %vm508, %v506
  %v510 = vrot.slane %v335, 3
  %511 = vrot.lane.b32.xlu0 %v510, 50
  %v512 = vpop.permute.xlu0 %511
  %vm514 = vcmask 682384
  %515 = vst.msk [vmem:[#allocation2 + $0x10] sm:$0x7] %vm514, %v512
  %vm516 = vcmask 685459
  %517 = vst.msk [vmem:[#allocation2 + $0x10] sm:$0x38] %vm516, %v500
  %v519 = vrot.slane %v335, 6
  %v520 = vrot.slane %v340, 6
  %v521 = vsel %vm417, %v519, %v520
  %522 = vrot.lane.b32.xlu0 %v521, 84
  %v523 = vpop.permute.xlu0 %522
  %vm525 = vcmask 961184
  %526 = vst.msk [vmem:[#allocation2 + $0x10] sm:$0x7] %vm525, %v523
  %v527 = vrot.slane %v340, 3
  %v528 = vsel %vm426, %v510, %v527
  %529 = vrot.lane.b32.xlu0 %v528, 50
  %v530 = vpop.permute.xlu0 %529
  %vm532 = vcmask 964259
  %533 = vst.msk [vmem:[#allocation2 + $0x10] sm:$0x38] %vm532, %v530
  %v534 = vrot.slane %v340, 1
  %535 = vrot.lane.b32.xlu0 %v534, 118
  %v536 = vpop.permute.xlu0 %535
  %vm538 = vcmask 1043376
  %539 = vst.msk [vmem:[#allocation2 + $0x10] sm:$0x7] %vm538, %v536
  %vm540 = vcmask 190464
  %541 = vst.msk [vmem:[#allocation2 + $0x18] sm:$0x7] %vm540, %v536
  %542 = vrot.lane.b32.xlu0 %v520, 84
  %v543 = vpop.permute.xlu0 %542
  %vm545 = vcmask 1046451
  %546 = vst.msk [vmem:[#allocation2 + $0x10] sm:$0x38] %vm545, %v543
  %vm547 = vcmask 193539
  %548 = vst.msk [vmem:[#allocation2 + $0x18] sm:$0x38] %vm547, %v543
  %v549 = vrot.slane %v340, 4
  %550 = vrot.lane.b32.xlu0 %v549, 24
  %v551 = vpop.permute.xlu0 %550
  %vm553 = vcmask 469184
  %554 = vst.msk [vmem:[#allocation2 + $0x18] sm:$0x7] %vm553, %v551
  %vm555 = vcmask 472259
  %556 = vst.msk [vmem:[#allocation2 + $0x18] sm:$0x38] %vm555, %v536
  %v558 = vrot.slane %v340, 7
  %v559 = vrot.slane %v345, 7
  %v560 = vsel %vm458, %v558, %v559
  %561 = vrot.lane.b32.xlu0 %v560, 58
  %v562 = vpop.permute.xlu0 %561
  %vm564 = vcmask 747984
  %565 = vst.msk [vmem:[#allocation2 + $0x18] sm:$0x7] %vm564, %v562
  %v566 = vrot.slane %v345, 4
  %v567 = vsel %vm467, %v549, %v566
  %568 = vrot.lane.b32.xlu0 %v567, 24
  %v569 = vpop.permute.xlu0 %568
  %vm571 = vcmask 751059
  %572 = vst.msk [vmem:[#allocation2 + $0x18] sm:$0x38] %vm571, %v569
  %v573 = vrot.slane %v345, 2
  %574 = vrot.lane.b32.xlu0 %v573, 92
  %v575 = vpop.permute.xlu0 %574
  %vm577 = vcmask 1026784
  %578 = vst.msk [vmem:[#allocation2 + $0x18] sm:$0x7] %vm577, %v575
  %579 = vrot.lane.b32.xlu0 %v559, 58
  %v580 = vpop.permute.xlu0 %579
  %vm582 = vcmask 1029859
  %583 = vst.msk [vmem:[#allocation2 + $0x18] sm:$0x38] %vm582, %v580
  %v584 = vrot.slane %v345, 5
  %585 = vrot.lane.b32.xlu0 %v584, 126
  %v586 = vpop.permute.xlu0 %585
  %vm588 = vcmask 1043440
  %589 = vst.msk [vmem:[#allocation2 + $0x18] sm:$0x7] %vm588, %v586
  %vm590 = vcmask 256000
  %591 = vst.msk [vmem:[#allocation2 + $0x20] sm:$0x7] %vm590, %v586
  %vm592 = vcmask 1046515
  %593 = vst.msk [vmem:[#allocation2 + $0x18] sm:$0x38] %vm592, %v575
  %vm594 = vcmask 259075
  %595 = vst.msk [vmem:[#allocation2 + $0x20] sm:$0x38] %vm594, %v575
  %597 = vrot.lane.b32.xlu0 %v350, 32
  %v598 = vpop.permute.xlu0 %597
  %vm600 = vcmask 534784
  %601 = vst.msk [vmem:[#allocation2 + $0x20] sm:$0x7] %vm600, %v598
  %v602 = vrot.slane %v350, 5
  %603 = vrot.lane.b32.xlu0 %v602, 126
  %v604 = vpop.permute.xlu0 %603
  %vm606 = vcmask 537859
  %607 = vst.msk [vmem:[#allocation2 + $0x20] sm:$0x38] %vm606, %v604
  %v608 = vrot.slane %v350, 3
  %609 = vrot.lane.b32.xlu0 %v608, 66
  %v610 = vpop.permute.xlu0 %609
  %vm612 = vcmask 813584
  %613 = vst.msk [vmem:[#allocation2 + $0x20] sm:$0x7] %vm612, %v610
  %vm614 = vcmask 816659
  %615 = vst.msk [vmem:[#allocation2 + $0x20] sm:$0x38] %vm614, %v598
  %v617 = vrot.slane %v350, 6
  %v618 = vrot.slane %v355, 6
  %v619 = vsel %vm417, %v617, %v618
  %620 = vrot.lane.b32.xlu0 %v619, 100
  %v621 = vpop.permute.xlu0 %620
  %vm623 = vcmask 1043232
  %624 = vst.msk [vmem:[#allocation2 + $0x20] sm:$0x7] %vm623, %v621
  %vm625 = vcmask 43008
  %626 = vst.msk [vmem:[#allocation2 + $0x28] sm:$0x7] %vm625, %v621
  %v627 = vrot.slane %v355, 3
  %v628 = vsel %vm426, %v608, %v627
  %629 = vrot.lane.b32.xlu0 %v628, 66
  %v630 = vpop.permute.xlu0 %629
  %vm632 = vcmask 1046307
  %633 = vst.msk [vmem:[#allocation2 + $0x20] sm:$0x38] %vm632, %v630
  %vm634 = vcmask 46083
  %635 = vst.msk [vmem:[#allocation2 + $0x28] sm:$0x38] %vm634, %v630
  %v636 = vrot.slane %v355, 1
  %637 = vrot.lane.b32.xlu0 %v636, 6
  %v638 = vpop.permute.xlu0 %637
  %vm640 = vcmask 321584
  %641 = vst.msk [vmem:[#allocation2 + $0x28] sm:$0x7] %vm640, %v638
  %642 = vrot.lane.b32.xlu0 %v618, 100
  %v643 = vpop.permute.xlu0 %642
  %vm645 = vcmask 324659
  %646 = vst.msk [vmem:[#allocation2 + $0x28] sm:$0x38] %vm645, %v643
  %v647 = vrot.slane %v355, 4
  %648 = vrot.lane.b32.xlu0 %v647, 40
  %v649 = vpop.permute.xlu0 %648
  %vm651 = vcmask 600384
  %652 = vst.msk [vmem:[#allocation2 + $0x28] sm:$0x7] %vm651, %v649
  %vm653 = vcmask 603459
  %654 = vst.msk [vmem:[#allocation2 + $0x28] sm:$0x38] %vm653, %v638
  %v656 = vrot.slane %v355, 7
  %v657 = vrot.slane %v360, 7
  %v658 = vsel %vm458, %v656, %v657
  %659 = vrot.lane.b32.xlu0 %v658, 74
  %v660 = vpop.permute.xlu0 %659
  %vm662 = vcmask 879184
  %663 = vst.msk [vmem:[#allocation2 + $0x28] sm:$0x7] %vm662, %v660
  %v664 = vrot.slane %v360, 4
  %v665 = vsel %vm467, %v647, %v664
  %666 = vrot.lane.b32.xlu0 %v665, 40
  %v667 = vpop.permute.xlu0 %666
  %vm669 = vcmask 882259
  %670 = vst.msk [vmem:[#allocation2 + $0x28] sm:$0x38] %vm669, %v667
  %v671 = vrot.slane %v360, 2
  %672 = vrot.lane.b32.xlu0 %v671, 108
  %v673 = vpop.permute.xlu0 %672
  %vm675 = vcmask 1043296
  %676 = vst.msk [vmem:[#allocation2 + $0x28] sm:$0x7] %vm675, %v673
  %vm677 = vcmask 108544
  %678 = vst.msk [vmem:[#allocation2 + $0x30] sm:$0x7] %vm677, %v673
  %679 = vrot.lane.b32.xlu0 %v657, 74
  %v680 = vpop.permute.xlu0 %679
  %vm682 = vcmask 1046371
  %683 = vst.msk [vmem:[#allocation2 + $0x28] sm:$0x38] %vm682, %v680
  %vm684 = vcmask 111619
  %685 = vst.msk [vmem:[#allocation2 + $0x30] sm:$0x38] %vm684, %v680
  %v686 = vrot.slane %v360, 5
  %687 = vrot.lane.b32.xlu0 %v686, 14
  %v688 = vpop.permute.xlu0 %687
  %vm690 = vcmask 387184
  %691 = vst.msk [vmem:[#allocation2 + $0x30] sm:$0x7] %vm690, %v688
  %vm692 = vcmask 390259
  %693 = vst.msk [vmem:[#allocation2 + $0x30] sm:$0x38] %vm692, %v673
  %695 = vrot.lane.b32.xlu0 %v365, 48
  %v696 = vpop.permute.xlu0 %695
  %vm698 = vcmask 665984
  %699 = vst.msk [vmem:[#allocation2 + $0x30] sm:$0x7] %vm698, %v696
  %v700 = vrot.slane %v365, 5
  %701 = vrot.lane.b32.xlu0 %v700, 14
  %v702 = vpop.permute.xlu0 %701
  %vm704 = vcmask 669059
  %705 = vst.msk [vmem:[#allocation2 + $0x30] sm:$0x38] %vm704, %v702
  %v706 = vrot.slane %v365, 3
  %707 = vrot.lane.b32.xlu0 %v706, 82
  %v708 = vpop.permute.xlu0 %707
  %vm710 = vcmask 944784
  %711 = vst.msk [vmem:[#allocation2 + $0x30] sm:$0x7] %vm710, %v708
  %vm712 = vcmask 947859
  %713 = vst.msk [vmem:[#allocation2 + $0x30] sm:$0x38] %vm712, %v696
  %v715 = vrot.slane %v365, 6
  %v716 = vrot.slane %v370, 6
  %v717 = vsel %vm417, %v715, %v716
  %718 = vrot.lane.b32.xlu0 %v717, 116
  %v719 = vpop.permute.xlu0 %718
  %vm721 = vcmask 1043360
  %722 = vst.msk [vmem:[#allocation2 + $0x30] sm:$0x7] %vm721, %v719
  %vm723 = vcmask 174080
  %724 = vst.msk [vmem:[#allocation2 + $0x38] sm:$0x7] %vm723, %v719
  %v725 = vrot.slane %v370, 3
  %v726 = vsel %vm426, %v706, %v725
  %727 = vrot.lane.b32.xlu0 %v726, 82
  %v728 = vpop.permute.xlu0 %727
  %vm730 = vcmask 1046435
  %731 = vst.msk [vmem:[#allocation2 + $0x30] sm:$0x38] %vm730, %v728
  %vm732 = vcmask 177155
  %733 = vst.msk [vmem:[#allocation2 + $0x38] sm:$0x38] %vm732, %v728
  %v734 = vrot.slane %v370, 1
  %735 = vrot.lane.b32.xlu0 %v734, 22
  %v736 = vpop.permute.xlu0 %735
  %vm738 = vcmask 452784
  %739 = vst.msk [vmem:[#allocation2 + $0x38] sm:$0x7] %vm738, %v736
  %740 = vrot.lane.b32.xlu0 %v716, 116
  %v741 = vpop.permute.xlu0 %740
  %vm743 = vcmask 455859
  %744 = vst.msk [vmem:[#allocation2 + $0x38] sm:$0x38] %vm743, %v741
  %v745 = vrot.slane %v370, 4
  %746 = vrot.lane.b32.xlu0 %v745, 56
  %v747 = vpop.permute.xlu0 %746
  %vm749 = vcmask 731584
  %750 = vst.msk [vmem:[#allocation2 + $0x38] sm:$0x7] %vm749, %v747
  %vm751 = vcmask 734659
  %752 = vst.msk [vmem:[#allocation2 + $0x38] sm:$0x38] %vm751, %v736
  %v754 = vrot.slane %v370, 7
  %v755 = vrot.slane %v375, 7
  %v756 = vsel %vm458, %v754, %v755
  %757 = vrot.lane.b32.xlu0 %v756, 90
  %v758 = vpop.permute.xlu0 %757
  %vm760 = vcmask 1010384
  %761 = vst.msk [vmem:[#allocation2 + $0x38] sm:$0x7] %vm760, %v758
  %v762 = vrot.slane %v375, 4
  %v763 = vsel %vm467, %v745, %v762
  %764 = vrot.lane.b32.xlu0 %v763, 56
  %v765 = vpop.permute.xlu0 %764
  %vm767 = vcmask 1013459
  %768 = vst.msk [vmem:[#allocation2 + $0x38] sm:$0x38] %vm767, %v765
  %v769 = vrot.slane %v375, 2
  %770 = vrot.lane.b32.xlu0 %v769, 124
  %v771 = vpop.permute.xlu0 %770
  %vm773 = vcmask 1043424
  %774 = vst.msk [vmem:[#allocation2 + $0x38] sm:$0x7] %vm773, %v771
  %vm775 = vcmask 239616
  %776 = vst.msk [vmem:[#allocation2 + $0x40] sm:$0x7] %vm775, %v771
  %777 = vrot.lane.b32.xlu0 %v755, 90
  %v778 = vpop.permute.xlu0 %777
  %vm780 = vcmask 1046499
  %781 = vst.msk [vmem:[#allocation2 + $0x38] sm:$0x38] %vm780, %v778
  %vm782 = vcmask 242691
  %783 = vst.msk [vmem:[#allocation2 + $0x40] sm:$0x38] %vm782, %v778
  %v784 = vrot.slane %v375, 5
  %785 = vrot.lane.b32.xlu0 %v784, 30
  %v786 = vpop.permute.xlu0 %785
  %vm788 = vcmask 518384
  %789 = vst.msk [vmem:[#allocation2 + $0x40] sm:$0x7] %vm788, %v786
  %vm790 = vcmask 521459
  %791 = vst.msk [vmem:[#allocation2 + $0x40] sm:$0x38] %vm790, %v771
  %793 = vrot.lane.b32.xlu0 %v380, 64
  %v794 = vpop.permute.xlu0 %793
  %vm796 = vcmask 797184
  %797 = vst.msk [vmem:[#allocation2 + $0x40] sm:$0x7] %vm796, %v794
  %v798 = vrot.slane %v380, 5
  %799 = vrot.lane.b32.xlu0 %v798, 30
  %v800 = vpop.permute.xlu0 %799
  %vm802 = vcmask 800259
  %803 = vst.msk [vmem:[#allocation2 + $0x40] sm:$0x38] %vm802, %v800
  %v804 = vrot.slane %v380, 3
  %805 = vrot.lane.b32.xlu0 %v804, 98
  %v806 = vpop.permute.xlu0 %805
  %vm808 = vcmask 1043216
  %809 = vst.msk [vmem:[#allocation2 + $0x40] sm:$0x7] %vm808, %v806
  %vm810 = vcmask 26624
  %811 = vst.msk [vmem:[#allocation2 + $0x48] sm:$0x7] %vm810, %v806
  %vm812 = vcmask 1046291
  %813 = vst.msk [vmem:[#allocation2 + $0x40] sm:$0x38] %vm812, %v794
  %vm814 = vcmask 29699
  %815 = vst.msk [vmem:[#allocation2 + $0x48] sm:$0x38] %vm814, %v794
  %v816 = vld [vmem:[%s3] sm:$0xff]
  %v817 = vld [vmem:[%s3 + $0x8] sm:$0xff]
  %v818 = vld [vmem:[#allocation2] sm:$0xff]
  %v819 = vld [vmem:[#allocation2 + $0x8] sm:$0xff]
  %v820 = vld [vmem:[#allocation2 + $0x10] sm:$0xff]
  %v821 = vld [vmem:[#allocation2 + $0x18] sm:$0xff]
  %v822 = vld [vmem:[#allocation2 + $0x20] sm:$0xff]
  %v823 = vld [vmem:[#allocation2 + $0x28] sm:$0xff]
  %v824 = vld [vmem:[#allocation2 + $0x30] sm:$0xff]
  %v825 = vld [vmem:[#allocation2 + $0x38] sm:$0xff]
  %v826 = vld [vmem:[#allocation2 + $0x40] sm:$0xff]
  %v827 = vld [vmem:[#allocation2 + $0x48] sm:$0xff]
  %vm828 = vcmask 64512
  %v830 = vsel %vm828, %v816, 0
  %v833 = vsel %vm828, %v817, 0
  %835 = vmatprep.subr.mxu0 %v819
  %836 = vmatpush1.msra.mxu0 %v818
  %837 = vmatprep.subr.mxu0 0.0
  %838 = vmatpush1.msra.mxu0 0.0
  %839 = vmatprep.subr.mxu0 0.0
  %840 = vmatpush1.msra.mxu0 0.0
  %841 = vmatprep.subr.mxu0 0.0
  %842 = vmatpush1.msra.mxu0 0.0
  %843 = vmatprep.subr.mxu0 0.0
  %844 = vmatpush1.msra.mxu0 0.0
  %845 = vmatprep.subr.mxu0 0.0
  %846 = vmatpush1.msra.mxu0 0.0
  %847 = vmatprep.subr.mxu0 0.0
  %848 = vmatpush1.msra.mxu0 0.0
  %849 = vmatprep.subr.mxu0 0.0
  %850 = vmatpush1.msra.mxu0 0.0
  %851 = vmatprep.subr.mxu0 0.0
  %852 = vmatpush1.msra.mxu0 0.0
  %853 = vmatprep.subr.mxu0 0.0
  %854 = vmatpush1.msra.mxu0 0.0
  %855 = vmatprep.subr.mxu0 0.0
  %856 = vmatpush1.msra.mxu0 0.0
  %857 = vmatprep.subr.mxu0 0.0
  %858 = vmatpush1.msra.mxu0 0.0
  %859 = vmatprep.subr.mxu0 0.0
  %860 = vmatpush1.msra.mxu0 0.0
  %861 = vmatprep.subr.mxu0 0.0
  %862 = vmatpush1.msra.mxu0 0.0
  %863 = vmatprep.subr.mxu0 0.0
  %864 = vmatpush1.msra.mxu0 0.0
  %865 = vmatprep.subr.mxu0 0.0
  %866 = vmatpush1.msra.mxu0 0.0
  %867 = vmatprep.subr.mxu0 0.0
  %868 = vmatpush1.msra.mxu0 0.0
  %869 = vmatprep.subr.mxu0 0.0
  %870 = vmatpush1.msra.mxu0 0.0
  %871 = vmatprep.subr.mxu0 0.0
  %872 = vmatpush1.msra.mxu0 0.0
  %873 = vmatprep.subr.mxu0 0.0
  %874 = vmatpush1.msra.mxu0 0.0
  %875 = vmatprep.subr.mxu0 0.0
  %876 = vmatpush1.msra.mxu0 0.0
  %877 = vmatprep.subr.mxu0 0.0
  %878 = vmatpush1.msra.mxu0 0.0
  %879 = vmatprep.subr.mxu0 0.0
  %880 = vmatpush1.msra.mxu0 0.0
  %881 = vmatprep.subr.mxu0 0.0
  %882 = vmatpush1.msra.mxu0 0.0
  %883 = vmatprep.subr.mxu0 0.0
  %884 = vmatpush1.msra.mxu0 0.0
  %885 = vmatprep.subr.mxu0 0.0
  %886 = vmatpush1.msra.mxu0 0.0
  %887 = vmatprep.subr.mxu0 0.0
  %888 = vmatpush1.msra.mxu0 0.0
  %889 = vmatprep.subr.mxu0 0.0
  %890 = vmatpush1.msra.mxu0 0.0
  %891 = vmatprep.subr.mxu0 0.0
  %892 = vmatpush1.msra.mxu0 0.0
  %893 = vmatprep.subr.mxu0 0.0
  %894 = vmatpush1.msra.mxu0 0.0
  %895 = vmatprep.subr.mxu0 0.0
  %896 = vmatpush1.msra.mxu0 0.0
  %897 = vmatprep.subr.mxu0 0.0
  %898 = vmatpush1.msra.mxu0 0.0
  %899 = vmatprep.mubr.f32.mxu0 0.0
  %900 = vmatmul.mubr.f32.gmra.mrb[0].mxu0 %v830
  %v901 = vpop.f32.mrb[0].mxu0
  %v902 = vadd.f32 0.0, %v901
  %v903 = vpop.f32.mrb[0].mxu0
  %v904 = vadd.f32 0.0, %v903
  %905 = vmatprep.mubr.f32.mxu0 0.0
  %906 = vmatmul.mubr.f32.gmra.mrb[0].mxu0 %v833
  %v907 = vpop.f32.mrb[0].mxu0
  %v908 = vadd.f32 0.0, %v907
  %v909 = vpop.f32.mrb[0].mxu0
  %v910 = vadd.f32 0.0, %v909
  %911 = vdwg.mxu0
  %912 = vmatprep.subr.mxu0 %v821
  %913 = vmatpush1.msra.mxu0 %v820
  %914 = vmatprep.subr.mxu0 0.0
  %915 = vmatpush1.msra.mxu0 0.0
  %916 = vmatprep.subr.mxu0 0.0
  %917 = vmatpush1.msra.mxu0 0.0
  %918 = vmatprep.subr.mxu0 0.0
  %919 = vmatpush1.msra.mxu0 0.0
  %920 = vmatprep.subr.mxu0 0.0
  %921 = vmatpush1.msra.mxu0 0.0
  %922 = vmatprep.subr.mxu0 0.0
  %923 = vmatpush1.msra.mxu0 0.0
  %924 = vmatprep.subr.mxu0 0.0
  %925 = vmatpush1.msra.mxu0 0.0
  %926 = vmatprep.subr.mxu0 0.0
  %927 = vmatpush1.msra.mxu0 0.0
  %928 = vmatprep.subr.mxu0 0.0
  %929 = vmatpush1.msra.mxu0 0.0
  %930 = vmatprep.subr.mxu0 0.0
  %931 = vmatpush1.msra.mxu0 0.0
  %932 = vmatprep.subr.mxu0 0.0
  %933 = vmatpush1.msra.mxu0 0.0
  %934 = vmatprep.subr.mxu0 0.0
  %935 = vmatpush1.msra.mxu0 0.0
  %936 = vmatprep.subr.mxu0 0.0
  %937 = vmatpush1.msra.mxu0 0.0
  %938 = vmatprep.subr.mxu0 0.0
  %939 = vmatpush1.msra.mxu0 0.0
  %940 = vmatprep.subr.mxu0 0.0
  %941 = vmatpush1.msra.mxu0 0.0
  %942 = vmatprep.subr.mxu0 0.0
  %943 = vmatpush1.msra.mxu0 0.0
  %944 = vmatprep.subr.mxu0 0.0
  %945 = vmatpush1.msra.mxu0 0.0
  %946 = vmatprep.subr.mxu0 0.0
  %947 = vmatpush1.msra.mxu0 0.0
  %948 = vmatprep.subr.mxu0 0.0
  %949 = vmatpush1.msra.mxu0 0.0
  %950 = vmatprep.subr.mxu0 0.0
  %951 = vmatpush1.msra.mxu0 0.0
  %952 = vmatprep.subr.mxu0 0.0
  %953 = vmatpush1.msra.mxu0 0.0
  %954 = vmatprep.subr.mxu0 0.0
  %955 = vmatpush1.msra.mxu0 0.0
  %956 = vmatprep.subr.mxu0 0.0
  %957 = vmatpush1.msra.mxu0 0.0
  %958 = vmatprep.subr.mxu0 0.0
  %959 = vmatpush1.msra.mxu0 0.0
  %960 = vmatprep.subr.mxu0 0.0
  %961 = vmatpush1.msra.mxu0 0.0
  %962 = vmatprep.subr.mxu0 0.0
  %963 = vmatpush1.msra.mxu0 0.0
  %964 = vmatprep.subr.mxu0 0.0
  %965 = vmatpush1.msra.mxu0 0.0
  %966 = vmatprep.subr.mxu0 0.0
  %967 = vmatpush1.msra.mxu0 0.0
  %968 = vmatprep.subr.mxu0 0.0
  %969 = vmatpush1.msra.mxu0 0.0
  %970 = vmatprep.subr.mxu0 0.0
  %971 = vmatpush1.msra.mxu0 0.0
  %972 = vmatprep.subr.mxu0 0.0
  %973 = vmatpush1.msra.mxu0 0.0
  %974 = vmatprep.subr.mxu0 0.0
  %975 = vmatpush1.msra.mxu0 0.0
  %976 = vmatprep.mubr.f32.mxu0 0.0
  %977 = vmatmul.mubr.f32.gmra.mrb[0].mxu0 %v830
  %v978 = vpop.f32.mrb[0].mxu0
  %v979 = vadd.f32 0.0, %v978
  %v980 = vpop.f32.mrb[0].mxu0
  %v981 = vadd.f32 0.0, %v980
  %982 = vmatprep.mubr.f32.mxu0 0.0
  %983 = vmatmul.mubr.f32.gmra.mrb[0].mxu0 %v833
  %v984 = vpop.f32.mrb[0].mxu0
  %v985 = vadd.f32 0.0, %v984
  %v986 = vpop.f32.mrb[0].mxu0
  %v987 = vadd.f32 0.0, %v986
  %988 = vdwg.mxu0
  %989 = vmatprep.subr.mxu0 %v823
  %990 = vmatpush1.msra.mxu0 %v822
  %991 = vmatprep.subr.mxu0 0.0
  %992 = vmatpush1.msra.mxu0 0.0
  %993 = vmatprep.subr.mxu0 0.0
  %994 = vmatpush1.msra.mxu0 0.0
  %995 = vmatprep.subr.mxu0 0.0
  %996 = vmatpush1.msra.mxu0 0.0
  %997 = vmatprep.subr.mxu0 0.0
  %998 = vmatpush1.msra.mxu0 0.0
  %999 = vmatprep.subr.mxu0 0.0
  %1000 = vmatpush1.msra.mxu0 0.0
  %1001 = vmatprep.subr.mxu0 0.0
  %1002 = vmatpush1.msra.mxu0 0.0
  %1003 = vmatprep.subr.mxu0 0.0
  %1004 = vmatpush1.msra.mxu0 0.0
  %1005 = vmatprep.subr.mxu0 0.0
  %1006 = vmatpush1.msra.mxu0 0.0
  %1007 = vmatprep.subr.mxu0 0.0
  %1008 = vmatpush1.msra.mxu0 0.0
  %1009 = vmatprep.subr.mxu0 0.0
  %1010 = vmatpush1.msra.mxu0 0.0
  %1011 = vmatprep.subr.mxu0 0.0
  %1012 = vmatpush1.msra.mxu0 0.0
  %1013 = vmatprep.subr.mxu0 0.0
  %1014 = vmatpush1.msra.mxu0 0.0
  %1015 = vmatprep.subr.mxu0 0.0
  %1016 = vmatpush1.msra.mxu0 0.0
  %1017 = vmatprep.subr.mxu0 0.0
  %1018 = vmatpush1.msra.mxu0 0.0
  %1019 = vmatprep.subr.mxu0 0.0
  %1020 = vmatpush1.msra.mxu0 0.0
  %1021 = vmatprep.subr.mxu0 0.0
  %1022 = vmatpush1.msra.mxu0 0.0
  %1023 = vmatprep.subr.mxu0 0.0
  %1024 = vmatpush1.msra.mxu0 0.0
  %1025 = vmatprep.subr.mxu0 0.0
  %1026 = vmatpush1.msra.mxu0 0.0
  %1027 = vmatprep.subr.mxu0 0.0
  %1028 = vmatpush1.msra.mxu0 0.0
  %1029 = vmatprep.subr.mxu0 0.0
  %1030 = vmatpush1.msra.mxu0 0.0
  %1031 = vmatprep.subr.mxu0 0.0
  %1032 = vmatpush1.msra.mxu0 0.0
  %1033 = vmatprep.subr.mxu0 0.0
  %1034 = vmatpush1.msra.mxu0 0.0
  %1035 = vmatprep.subr.mxu0 0.0
  %1036 = vmatpush1.msra.mxu0 0.0
  %1037 = vmatprep.subr.mxu0 0.0
  %1038 = vmatpush1.msra.mxu0 0.0
  %1039 = vmatprep.subr.mxu0 0.0
  %1040 = vmatpush1.msra.mxu0 0.0
  %1041 = vmatprep.subr.mxu0 0.0
  %1042 = vmatpush1.msra.mxu0 0.0
  %1043 = vmatprep.subr.mxu0 0.0
  %1044 = vmatpush1.msra.mxu0 0.0
  %1045 = vmatprep.subr.mxu0 0.0
  %1046 = vmatpush1.msra.mxu0 0.0
  %1047 = vmatprep.subr.mxu0 0.0
  %1048 = vmatpush1.msra.mxu0 0.0
  %1049 = vmatprep.subr.mxu0 0.0
  %1050 = vmatpush1.msra.mxu0 0.0
  %1051 = vmatprep.subr.mxu0 0.0
  %1052 = vmatpush1.msra.mxu0 0.0
  %1053 = vmatprep.mubr.f32.mxu0 0.0
  %1054 = vmatmul.mubr.f32.gmra.mrb[0].mxu0 %v830
  %v1055 = vpop.f32.mrb[0].mxu0
  %v1056 = vadd.f32 0.0, %v1055
  %v1057 = vpop.f32.mrb[0].mxu0
  %v1058 = vadd.f32 0.0, %v1057
  %1059 = vmatprep.mubr.f32.mxu0 0.0
  %1060 = vmatmul.mubr.f32.gmra.mrb[0].mxu0 %v833
  %v1061 = vpop.f32.mrb[0].mxu0
  %v1062 = vadd.f32 0.0, %v1061
  %v1063 = vpop.f32.mrb[0].mxu0
  %v1064 = vadd.f32 0.0, %v1063
  %1065 = vdwg.mxu0
  %1066 = vmatprep.subr.mxu0 %v825
  %1067 = vmatpush1.msra.mxu0 %v824
  %1068 = vmatprep.subr.mxu0 0.0
  %1069 = vmatpush1.msra.mxu0 0.0
  %1070 = vmatprep.subr.mxu0 0.0
  %1071 = vmatpush1.msra.mxu0 0.0
  %1072 = vmatprep.subr.mxu0 0.0
  %1073 = vmatpush1.msra.mxu0 0.0
  %1074 = vmatprep.subr.mxu0 0.0
  %1075 = vmatpush1.msra.mxu0 0.0
  %1076 = vmatprep.subr.mxu0 0.0
  %1077 = vmatpush1.msra.mxu0 0.0
  %1078 = vmatprep.subr.mxu0 0.0
  %1079 = vmatpush1.msra.mxu0 0.0
  %1080 = vmatprep.subr.mxu0 0.0
  %1081 = vmatpush1.msra.mxu0 0.0
  %1082 = vmatprep.subr.mxu0 0.0
  %1083 = vmatpush1.msra.mxu0 0.0
  %1084 = vmatprep.subr.mxu0 0.0
  %1085 = vmatpush1.msra.mxu0 0.0
  %1086 = vmatprep.subr.mxu0 0.0
  %1087 = vmatpush1.msra.mxu0 0.0
  %1088 = vmatprep.subr.mxu0 0.0
  %1089 = vmatpush1.msra.mxu0 0.0
  %1090 = vmatprep.subr.mxu0 0.0
  %1091 = vmatpush1.msra.mxu0 0.0
  %1092 = vmatprep.subr.mxu0 0.0
  %1093 = vmatpush1.msra.mxu0 0.0
  %1094 = vmatprep.subr.mxu0 0.0
  %1095 = vmatpush1.msra.mxu0 0.0
  %1096 = vmatprep.subr.mxu0 0.0
  %1097 = vmatpush1.msra.mxu0 0.0
  %1098 = vmatprep.subr.mxu0 0.0
  %1099 = vmatpush1.msra.mxu0 0.0
  %1100 = vmatprep.subr.mxu0 0.0
  %1101 = vmatpush1.msra.mxu0 0.0
  %1102 = vmatprep.subr.mxu0 0.0
  %1103 = vmatpush1.msra.mxu0 0.0
  %1104 = vmatprep.subr.mxu0 0.0
  %1105 = vmatpush1.msra.mxu0 0.0
  %1106 = vmatprep.subr.mxu0 0.0
  %1107 = vmatpush1.msra.mxu0 0.0
  %1108 = vmatprep.subr.mxu0 0.0
  %1109 = vmatpush1.msra.mxu0 0.0
  %1110 = vmatprep.subr.mxu0 0.0
  %1111 = vmatpush1.msra.mxu0 0.0
  %1112 = vmatprep.subr.mxu0 0.0
  %1113 = vmatpush1.msra.mxu0 0.0
  %1114 = vmatprep.subr.mxu0 0.0
  %1115 = vmatpush1.msra.mxu0 0.0
  %1116 = vmatprep.subr.mxu0 0.0
  %1117 = vmatpush1.msra.mxu0 0.0
  %1118 = vmatprep.subr.mxu0 0.0
  %1119 = vmatpush1.msra.mxu0 0.0
  %1120 = vmatprep.subr.mxu0 0.0
  %1121 = vmatpush1.msra.mxu0 0.0
  %1122 = vmatprep.subr.mxu0 0.0
  %1123 = vmatpush1.msra.mxu0 0.0
  %1124 = vmatprep.subr.mxu0 0.0
  %1125 = vmatpush1.msra.mxu0 0.0
  %1126 = vmatprep.subr.mxu0 0.0
  %1127 = vmatpush1.msra.mxu0 0.0
  %1128 = vmatprep.subr.mxu0 0.0
  %1129 = vmatpush1.msra.mxu0 0.0
  %1130 = vmatprep.mubr.f32.mxu0 0.0
  %1131 = vmatmul.mubr.f32.gmra.mrb[0].mxu0 %v830
  %v1132 = vpop.f32.mrb[0].mxu0
  %v1133 = vadd.f32 0.0, %v1132
  %v1134 = vpop.f32.mrb[0].mxu0
  %v1135 = vadd.f32 0.0, %v1134
  %1136 = vmatprep.mubr.f32.mxu0 0.0
  %1137 = vmatmul.mubr.f32.gmra.mrb[0].mxu0 %v833
  %v1138 = vpop.f32.mrb[0].mxu0
  %v1139 = vadd.f32 0.0, %v1138
  %v1140 = vpop.f32.mrb[0].mxu0
  %v1141 = vadd.f32 0.0, %v1140
  %1142 = vdwg.mxu0
  %1143 = vmatprep.subr.mxu0 %v827
  %1144 = vmatpush1.msra.mxu0 %v826
  %1145 = vmatprep.subr.mxu0 0.0
  %1146 = vmatpush1.msra.mxu0 0.0
  %1147 = vmatprep.subr.mxu0 0.0
  %1148 = vmatpush1.msra.mxu0 0.0
  %1149 = vmatprep.subr.mxu0 0.0
  %1150 = vmatpush1.msra.mxu0 0.0
  %1151 = vmatprep.subr.mxu0 0.0
  %1152 = vmatpush1.msra.mxu0 0.0
  %1153 = vmatprep.subr.mxu0 0.0
  %1154 = vmatpush1.msra.mxu0 0.0
  %1155 = vmatprep.subr.mxu0 0.0
  %1156 = vmatpush1.msra.mxu0 0.0
  %1157 = vmatprep.subr.mxu0 0.0
  %1158 = vmatpush1.msra.mxu0 0.0
  %1159 = vmatprep.subr.mxu0 0.0
  %1160 = vmatpush1.msra.mxu0 0.0
  %1161 = vmatprep.subr.mxu0 0.0
  %1162 = vmatpush1.msra.mxu0 0.0
  %1163 = vmatprep.subr.mxu0 0.0
  %1164 = vmatpush1.msra.mxu0 0.0
  %1165 = vmatprep.subr.mxu0 0.0
  %1166 = vmatpush1.msra.mxu0 0.0
  %1167 = vmatprep.subr.mxu0 0.0
  %1168 = vmatpush1.msra.mxu0 0.0
  %1169 = vmatprep.subr.mxu0 0.0
  %1170 = vmatpush1.msra.mxu0 0.0
  %1171 = vmatprep.subr.mxu0 0.0
  %1172 = vmatpush1.msra.mxu0 0.0
  %1173 = vmatprep.subr.mxu0 0.0
  %1174 = vmatpush1.msra.mxu0 0.0
  %1175 = vmatprep.subr.mxu0 0.0
  %1176 = vmatpush1.msra.mxu0 0.0
  %1177 = vmatprep.subr.mxu0 0.0
  %1178 = vmatpush1.msra.mxu0 0.0
  %1179 = vmatprep.subr.mxu0 0.0
  %1180 = vmatpush1.msra.mxu0 0.0
  %1181 = vmatprep.subr.mxu0 0.0
  %1182 = vmatpush1.msra.mxu0 0.0
  %1183 = vmatprep.subr.mxu0 0.0
  %1184 = vmatpush1.msra.mxu0 0.0
  %1185 = vmatprep.subr.mxu0 0.0
  %1186 = vmatpush1.msra.mxu0 0.0
  %1187 = vmatprep.subr.mxu0 0.0
  %1188 = vmatpush1.msra.mxu0 0.0
  %1189 = vmatprep.subr.mxu0 0.0
  %1190 = vmatpush1.msra.mxu0 0.0
  %1191 = vmatprep.subr.mxu0 0.0
  %1192 = vmatpush1.msra.mxu0 0.0
  %1193 = vmatprep.subr.mxu0 0.0
  %1194 = vmatpush1.msra.mxu0 0.0
  %1195 = vmatprep.subr.mxu0 0.0
  %1196 = vmatpush1.msra.mxu0 0.0
  %1197 = vmatprep.subr.mxu0 0.0
  %1198 = vmatpush1.msra.mxu0 0.0
  %1199 = vmatprep.subr.mxu0 0.0
  %1200 = vmatpush1.msra.mxu0 0.0
  %1201 = vmatprep.subr.mxu0 0.0
  %1202 = vmatpush1.msra.mxu0 0.0
  %1203 = vmatprep.subr.mxu0 0.0
  %1204 = vmatpush1.msra.mxu0 0.0
  %1205 = vmatprep.subr.mxu0 0.0
  %1206 = vmatpush1.msra.mxu0 0.0
  %1207 = vmatprep.mubr.f32.mxu0 0.0
  %1208 = vmatmul.mubr.f32.gmra.mrb[0].mxu0 %v830
  %v1209 = vpop.f32.mrb[0].mxu0
  %v1210 = vadd.f32 0.0, %v1209
  %v1211 = vpop.f32.mrb[0].mxu0
  %v1212 = vadd.f32 0.0, %v1211
  %1213 = vmatprep.mubr.f32.mxu0 0.0
  %1214 = vmatmul.mubr.f32.gmra.mrb[0].mxu0 %v833
  %v1215 = vpop.f32.mrb[0].mxu0
  %v1216 = vadd.f32 0.0, %v1215
  %v1217 = vpop.f32.mrb[0].mxu0
  %v1218 = vadd.f32 0.0, %v1217
  %1219 = vdwg.mxu0
  %v1220 = vmul.f32 %v902, %v908
  %v1221 = vmul.f32 %v904, %v910
  %v1222 = vmul.f32 %v979, %v985
  %v1223 = vmul.f32 %v981, %v987
  %v1224 = vmul.f32 %v1056, %v1062
  %v1225 = vmul.f32 %v1058, %v1064
  %v1226 = vmul.f32 %v1133, %v1139
  %v1227 = vmul.f32 %v1135, %v1141
  %v1228 = vmul.f32 %v1210, %v1216
  %v1229 = vmul.f32 %v1212, %v1218
  %1230 = vst [vmem:[%s4] sm:$0xff] %v1220
  %1231 = vst [vmem:[%s4 + $0x8] sm:$0xff] %v1221
  %1232 = vst [vmem:[%s4 + $0x10] sm:$0xff] %v1222
  %1233 = vst [vmem:[%s4 + $0x18] sm:$0xff] %v1223
  %1234 = vst [vmem:[%s4 + $0x20] sm:$0xff] %v1224
  %1235 = vst [vmem:[%s4 + $0x28] sm:$0xff] %v1225
  %1236 = vst [vmem:[%s4 + $0x30] sm:$0xff] %v1226
  %1237 = vst [vmem:[%s4 + $0x38] sm:$0xff] %v1227
  %1238 = vst [vmem:[%s4 + $0x40] sm:$0xff] %v1228
  %vm1239 = vcmask 31744
  %1240 = vst.msk [vmem:[%s4 + $0x48] sm:$0xff] %vm1239, %v1229
  // Predicated region
  $region18: #{forward.1} parent=0 // pred_check
    _
  $region19: #{forward.1} parent=0 // pred_check_branch
    %1242 = sbr.rel (0) target = $region21
  $region20: #{forward.1} parent=0 // pred_region
    _
  $region21: #{forward.1} parent=0 // pred_fallthru
    _
  // Predicated region
  $region22: #{forward.1} parent=0 // pred_check
    _
  $region23: #{forward.1} parent=0 // pred_check_branch
    %1244 = sbr.rel (0) target = $region25
  $region24: #{forward.1} parent=0 // pred_region
    _
  $region25: #{forward.1} parent=0 // pred_fallthru
    _

</llo_original>
